<compile_context>
chip_gen: v5e
topology: v5e:2x2
jax: 0.10.0
libtpu: 0.0.40
codegen_flags: <defaults>
</compile_context>

<pallas_src>
import functools
import math

import jax
import jax.numpy as jnp
from jax.experimental import pallas as pl
from jax.experimental.pallas import tpu as pltpu


def _rel_pos_kernel(cur_ref, nxt_ref, w_ref, b_ref, o_ref, xg_ref, acc_ref,
                    *, K, G, Cg, TS, pad_front):
    # cur_ref : (1, TS, D)        f32 padded activations, rows [s*TS, s*TS + TS)
    # nxt_ref : (1, halo, D)      f32 padded activations, rows [s*TS + TS, s*TS + TS + halo)
    # w_ref   : (K, G, Cg, Cg)    bf16 per-group conv weight (in_local, out_local)
    # b_ref   : (1, D)            f32 bias
    # o_ref   : (1, TS, D)        output tile
    # xg_ref  : (G, TS+halo, Cg)  bf16 scratch: per-group window slabs (MXU inputs)
    # acc_ref : (G, TS, Cg)       f32 scratch accumulator
    halo = xg_ref.shape[1] - TS

    # Split the (TS + halo, D) window into per-group slabs, cast to bf16 once.
    for g in range(G):
        lo = g * Cg
        xg_ref[g, 0:TS, :] = cur_ref[0, :, lo:lo + Cg].astype(jnp.bfloat16)
        xg_ref[g, TS:TS + halo, :] = nxt_ref[0, :, lo:lo + Cg].astype(jnp.bfloat16)

    acc_ref[...] = jnp.zeros_like(acc_ref)

    def tap(k):
        for g in range(G):
            acc_ref[g] += jnp.dot(
                xg_ref[g, pl.ds(k, TS), :], w_ref[k, g],
                preferred_element_type=jnp.float32)

    if K <= 16:                       # small kernel width: full static unroll
        for k in range(K):
            tap(k)
    else:                             # e.g. wav2vec2 K=128: bounded live ranges
        def body(k, carry):
            tap(k)
            return carry
        jax.lax.fori_loop(0, K, body, 0, unroll=4)

    # Recombine groups on the lane axis; bias + exact (erf) GELU in f32.
    y = jnp.concatenate([acc_ref[g] for g in range(G)], axis=-1) + b_ref[...]
    y = 0.5 * y * (1.0 + jax.lax.erf(y * (1.0 / math.sqrt(2.0))))

    # Residual comes from the same padded window (exact f32), rows [pad_front, pad_front+TS).
    if pad_front == 0:
        res = cur_ref[0]
    else:
        res = jnp.concatenate(
            [cur_ref[0, pad_front:, :], nxt_ref[0, 0:pad_front, :]], axis=0)

    o_ref[0] = (res.astype(jnp.float32) + y).astype(o_ref.dtype)


def relative_positional_encoder(x, weight, bias, conv_pos, groups, *, seq_tile=None):
    """x: (B, S, D) float.  weight: (D, D//groups, K) (torch Conv1d OIW).  bias: (D,)."""
    B, S, D = x.shape
    K = int(conv_pos)
    G = int(groups)
    assert D % G == 0, "dim must be divisible by groups"
    Cg = D // G
    pad_front = K // 2  # SamePad: even K drops the extra trailing output

    # Sequence tiling: halo = (K-1) rounded up to a sublane multiple; TS a multiple of halo.
    halo = max(8, ((K - 1 + 7) // 8) * 8)
    if seq_tile is None:
        seq_tile = 256
    TS = max(min(int(seq_tile), S), halo)
    TS = ((TS + halo - 1) // halo) * halo
    n_s = (S + TS - 1) // TS
    S_pad = n_s * TS
    R = S_pad + TS  # padded rows: front pad + room for the last tile's halo block

    # TODO(synk): the wrapper-side jnp.pad costs one extra HBM round trip of the
    # activations; an in-kernel masked-halo variant would avoid it.
    xpad = jnp.pad(x, ((0, 0), (pad_front, R - pad_front - S), (0, 0)))

    # Compact per-group weight (K, G, Cg_in, Cg_out), bf16 for the MXU.
    w_pg = jnp.transpose(weight.reshape(G, Cg, Cg, K), (3, 0, 2, 1)).astype(jnp.bfloat16)
    bias2d = bias.reshape(1, D).astype(jnp.float32)

    nxt_stride = TS // halo
    kernel = functools.partial(
        _rel_pos_kernel, K=K, G=G, Cg=Cg, TS=TS, pad_front=pad_front)

    out = pl.pallas_call(
        kernel,
        out_shape=jax.ShapeDtypeStruct((B, S_pad, D), x.dtype),
        grid_spec=pltpu.PrefetchScalarGridSpec(
            num_scalar_prefetch=0,
            grid=(B, n_s),
            in_specs=[
                pl.BlockSpec((1, TS, D), lambda b, s: (b, s, 0)),                      # current tile
                pl.BlockSpec((1, halo, D), lambda b, s: (b, (s + 1) * nxt_stride, 0)), # halo block
                pl.BlockSpec((K, G, Cg, Cg), lambda b, s: (0, 0, 0, 0)),               # resident weight
                pl.BlockSpec((1, D), lambda b, s: (0, 0)),                             # resident bias
            ],
            out_specs=pl.BlockSpec((1, TS, D), lambda b, s: (b, s, 0)),
            scratch_shapes=[
                pltpu.VMEM((G, TS + halo, Cg), jnp.bfloat16),
                pltpu.VMEM((G, TS, Cg), jnp.float32),
            ],
        ),
        compiler_params=pltpu.CompilerParams(
            dimension_semantics=("parallel", "parallel"),
            vmem_limit_bytes=48 * 1024 * 1024,
        ),
    )(xpad, xpad, w_pg, bias2d)

    return out[:, :S, :]


def _reference(x, weight, bias, conv_pos, groups):
    """Pure-JAX reference matching the PyTorch forward."""
    K = conv_pos
    pad = K // 2
    x_ncw = jnp.transpose(x, (0, 2, 1))  # (B, D, S) — torch NCHW-style conv input
    out = jax.lax.conv_general_dilated(
        x_ncw, weight, window_strides=(1,), padding=[(pad, pad)],
        dimension_numbers=("NCH", "OIH", "NCH"),
        feature_group_count=groups,
    )
    out = out + bias[None, :, None]
    if K % 2 == 0:  # SamePad
        out = out[:, :, :-1]
    out = jax.nn.gelu(out, approximate=False)
    return x + jnp.transpose(out, (0, 2, 1))


if __name__ == "__main__":
    B, S, D = 2, 16, 64
    conv_pos, groups = 5, 4

    key = jax.random.PRNGKey(0)
    kx, kw = jax.random.split(key)
    x = jax.random.normal(kx, (B, S, D), jnp.float32)

    # Deterministic parameter init matching the module's __init__:
    #   weight ~ N(0, sqrt(4/(K*dim))), bias = 0, then weight_norm(dim=2)
    std = math.sqrt(4.0 * 1.0 / (conv_pos * D))
    weight_v = std * jax.random.normal(kw, (D, D // groups, conv_pos), jnp.float32)
    v_norm = jnp.sqrt(jnp.sum(weight_v ** 2, axis=(0, 1), keepdims=True))  # (1,1,K)
    weight_g = v_norm                       # weight_norm init: g = ||v|| per tap
    weight = weight_g * weight_v / v_norm   # effective conv weight
    bias = jnp.zeros((D,), jnp.float32)

    # seq_tile=8 exercises the multi-tile (halo) path on the small demo shape.
    out = relative_positional_encoder(x, weight, bias, conv_pos, groups, seq_tile=8)
    out = jax.block_until_ready(out)

    ref = _reference(x, weight, bias, conv_pos, groups)
    if bool(jnp.allclose(out, ref, atol=1e-2, rtol=1e-2)):
        print("KERNEL_OK")
    else:
        print("MISMATCH", float(jnp.max(jnp.abs(out - ref))))
</pallas_src>

<mosaic_0001>
module attributes {stable_mosaic.version = 11 : i64} {
  func.func @_rel_pos_kernel(%arg0: i32, %arg1: i32, %arg2: memref<1x8x64xf32, #tpu.memory_space<vmem>>, %arg3: memref<1x8x64xf32, #tpu.memory_space<vmem>>, %arg4: memref<5x4x16x16xbf16, #tpu.memory_space<vmem>>, %arg5: memref<1x64xf32, #tpu.memory_space<vmem>>, %arg6: memref<1x8x64xf32, #tpu.memory_space<vmem>>, %arg7: memref<4x16x16xbf16, #tpu.memory_space<vmem>>, %arg8: memref<4x8x16xf32, #tpu.memory_space<vmem>>) attributes {dimension_semantics = [#tpu.dimension_semantics<parallel>, #tpu.dimension_semantics<parallel>], iteration_bounds = array<i64: 2, 2>, scalar_prefetch = 0 : i64, scratch_operands = 2 : i64, tpu.core_type = #tpu.core_type<tc>, window_params = [{transform_indices = @transform_0, window_bounds = array<i64: 1, 8, 64>}, {transform_indices = @transform_1, window_bounds = array<i64: 1, 8, 64>}, {pipeline_mode = #tpu.pipeline_mode<synchronous>, transform_indices = @transform_2, window_bounds = array<i64: 5, 4, 16, 16>}, {pipeline_mode = #tpu.pipeline_mode<synchronous>, transform_indices = @transform_3, window_bounds = array<i64: 1, 64>}, {transform_indices = @transform_4, window_bounds = array<i64: 1, 8, 64>}]} {
    %c0 = arith.constant 0 : index
    %c0_0 = arith.constant 0 : index
    %c0_1 = arith.constant 0 : index
    %0 = vector.load %arg2[%c0, %c0_0, %c0_1] : memref<1x8x64xf32, #tpu.memory_space<vmem>>, vector<1x8x16xf32>
    %1 = vector.shape_cast %0 : vector<1x8x16xf32> to vector<8x16xf32>
    %2 = arith.truncf %1 : vector<8x16xf32> to vector<8x16xbf16>
    %c0_2 = arith.constant 0 : index
    %c0_3 = arith.constant 0 : index
    %c0_4 = arith.constant 0 : index
    %3 = vector.load %arg7[%c0_2, %c0_3, %c0_4] : memref<4x16x16xbf16, #tpu.memory_space<vmem>>, vector<1x8x16xbf16>
    %4 = vector.shape_cast %3 : vector<1x8x16xbf16> to vector<8x16xbf16>
    %5 = vector.shape_cast %2 : vector<8x16xbf16> to vector<1x8x16xbf16>
    tpu.vector_store %arg7[%c0_2, %c0_3, %c0_4], %5 {strides = array<i32>} : memref<4x16x16xbf16, #tpu.memory_space<vmem>>, vector<1x8x16xbf16>,
    %c0_5 = arith.constant 0 : index
    %c0_6 = arith.constant 0 : index
    %c0_7 = arith.constant 0 : index
    %6 = vector.load %arg3[%c0_5, %c0_6, %c0_7] : memref<1x8x64xf32, #tpu.memory_space<vmem>>, vector<1x8x16xf32>
    %7 = vector.shape_cast %6 : vector<1x8x16xf32> to vector<8x16xf32>
    %8 = arith.truncf %7 : vector<8x16xf32> to vector<8x16xbf16>
    %c0_8 = arith.constant 0 : index
    %c8 = arith.constant 8 : index
    %c0_9 = arith.constant 0 : index
    %9 = vector.load %arg7[%c0_8, %c8, %c0_9] : memref<4x16x16xbf16, #tpu.memory_space<vmem>>, vector<1x8x16xbf16>
    %10 = vector.shape_cast %9 : vector<1x8x16xbf16> to vector<8x16xbf16>
    %11 = vector.shape_cast %8 : vector<8x16xbf16> to vector<1x8x16xbf16>
    tpu.vector_store %arg7[%c0_8, %c8, %c0_9], %11 {strides = array<i32>} : memref<4x16x16xbf16, #tpu.memory_space<vmem>>, vector<1x8x16xbf16>,
    %c0_10 = arith.constant 0 : index
    %c0_11 = arith.constant 0 : index
    %c16 = arith.constant 16 : index
    %12 = vector.load %arg2[%c0_10, %c0_11, %c16] : memref<1x8x64xf32, #tpu.memory_space<vmem>>, vector<1x8x16xf32>
    %13 = vector.shape_cast %12 : vector<1x8x16xf32> to vector<8x16xf32>
    %14 = arith.truncf %13 : vector<8x16xf32> to vector<8x16xbf16>
    %c1 = arith.constant 1 : index
    %c0_12 = arith.constant 0 : index
    %c0_13 = arith.constant 0 : index
    %15 = vector.load %arg7[%c1, %c0_12, %c0_13] : memref<4x16x16xbf16, #tpu.memory_space<vmem>>, vector<1x8x16xbf16>
    %16 = vector.shape_cast %15 : vector<1x8x16xbf16> to vector<8x16xbf16>
    %17 = vector.shape_cast %14 : vector<8x16xbf16> to vector<1x8x16xbf16>
    tpu.vector_store %arg7[%c1, %c0_12, %c0_13], %17 {strides = array<i32>} : memref<4x16x16xbf16, #tpu.memory_space<vmem>>, vector<1x8x16xbf16>,
    %c0_14 = arith.constant 0 : index
    %c0_15 = arith.constant 0 : index
    %c16_16 = arith.constant 16 : index
    %18 = vector.load %arg3[%c0_14, %c0_15, %c16_16] : memref<1x8x64xf32, #tpu.memory_space<vmem>>, vector<1x8x16xf32>
    %19 = vector.shape_cast %18 : vector<1x8x16xf32> to vector<8x16xf32>
    %20 = arith.truncf %19 : vector<8x16xf32> to vector<8x16xbf16>
    %c1_17 = arith.constant 1 : index
    %c8_18 = arith.constant 8 : index
    %c0_19 = arith.constant 0 : index
    %21 = vector.load %arg7[%c1_17, %c8_18, %c0_19] : memref<4x16x16xbf16, #tpu.memory_space<vmem>>, vector<1x8x16xbf16>
    %22 = vector.shape_cast %21 : vector<1x8x16xbf16> to vector<8x16xbf16>
    %23 = vector.shape_cast %20 : vector<8x16xbf16> to vector<1x8x16xbf16>
    tpu.vector_store %arg7[%c1_17, %c8_18, %c0_19], %23 {strides = array<i32>} : memref<4x16x16xbf16, #tpu.memory_space<vmem>>, vector<1x8x16xbf16>,
    %c0_20 = arith.constant 0 : index
    %c0_21 = arith.constant 0 : index
    %c32 = arith.constant 32 : index
    %24 = vector.load %arg2[%c0_20, %c0_21, %c32] : memref<1x8x64xf32, #tpu.memory_space<vmem>>, vector<1x8x16xf32>
    %25 = vector.shape_cast %24 : vector<1x8x16xf32> to vector<8x16xf32>
    %26 = arith.truncf %25 : vector<8x16xf32> to vector<8x16xbf16>
    %c2 = arith.constant 2 : index
    %c0_22 = arith.constant 0 : index
    %c0_23 = arith.constant 0 : index
    %27 = vector.load %arg7[%c2, %c0_22, %c0_23] : memref<4x16x16xbf16, #tpu.memory_space<vmem>>, vector<1x8x16xbf16>
    %28 = vector.shape_cast %27 : vector<1x8x16xbf16> to vector<8x16xbf16>
    %29 = vector.shape_cast %26 : vector<8x16xbf16> to vector<1x8x16xbf16>
    tpu.vector_store %arg7[%c2, %c0_22, %c0_23], %29 {strides = array<i32>} : memref<4x16x16xbf16, #tpu.memory_space<vmem>>, vector<1x8x16xbf16>,
    %c0_24 = arith.constant 0 : index
    %c0_25 = arith.constant 0 : index
    %c32_26 = arith.constant 32 : index
    %30 = vector.load %arg3[%c0_24, %c0_25, %c32_26] : memref<1x8x64xf32, #tpu.memory_space<vmem>>, vector<1x8x16xf32>
    %31 = vector.shape_cast %30 : vector<1x8x16xf32> to vector<8x16xf32>
    %32 = arith.truncf %31 : vector<8x16xf32> to vector<8x16xbf16>
    %c2_27 = arith.constant 2 : index
    %c8_28 = arith.constant 8 : index
    %c0_29 = arith.constant 0 : index
    %33 = vector.load %arg7[%c2_27, %c8_28, %c0_29] : memref<4x16x16xbf16, #tpu.memory_space<vmem>>, vector<1x8x16xbf16>
    %34 = vector.shape_cast %33 : vector<1x8x16xbf16> to vector<8x16xbf16>
    %35 = vector.shape_cast %32 : vector<8x16xbf16> to vector<1x8x16xbf16>
    tpu.vector_store %arg7[%c2_27, %c8_28, %c0_29], %35 {strides = array<i32>} : memref<4x16x16xbf16, #tpu.memory_space<vmem>>, vector<1x8x16xbf16>,
    %c0_30 = arith.constant 0 : index
    %c0_31 = arith.constant 0 : index
    %c48 = arith.constant 48 : index
    %36 = vector.load %arg2[%c0_30, %c0_31, %c48] : memref<1x8x64xf32, #tpu.memory_space<vmem>>, vector<1x8x16xf32>
    %37 = vector.shape_cast %36 : vector<1x8x16xf32> to vector<8x16xf32>
    %38 = arith.truncf %37 : vector<8x16xf32> to vector<8x16xbf16>
    %c3 = arith.constant 3 : index
    %c0_32 = arith.constant 0 : index
    %c0_33 = arith.constant 0 : index
    %39 = vector.load %arg7[%c3, %c0_32, %c0_33] : memref<4x16x16xbf16, #tpu.memory_space<vmem>>, vector<1x8x16xbf16>
    %40 = vector.shape_cast %39 : vector<1x8x16xbf16> to vector<8x16xbf16>
    %41 = vector.shape_cast %38 : vector<8x16xbf16> to vector<1x8x16xbf16>
    tpu.vector_store %arg7[%c3, %c0_32, %c0_33], %41 {strides = array<i32>} : memref<4x16x16xbf16, #tpu.memory_space<vmem>>, vector<1x8x16xbf16>,
    %c0_34 = arith.constant 0 : index
    %c0_35 = arith.constant 0 : index
    %c48_36 = arith.constant 48 : index
    %42 = vector.load %arg3[%c0_34, %c0_35, %c48_36] : memref<1x8x64xf32, #tpu.memory_space<vmem>>, vector<1x8x16xf32>
    %43 = vector.shape_cast %42 : vector<1x8x16xf32> to vector<8x16xf32>
    %44 = arith.truncf %43 : vector<8x16xf32> to vector<8x16xbf16>
    %c3_37 = arith.constant 3 : index
    %c8_38 = arith.constant 8 : index
    %c0_39 = arith.constant 0 : index
    %45 = vector.load %arg7[%c3_37, %c8_38, %c0_39] : memref<4x16x16xbf16, #tpu.memory_space<vmem>>, vector<1x8x16xbf16>
    %46 = vector.shape_cast %45 : vector<1x8x16xbf16> to vector<8x16xbf16>
    %47 = vector.shape_cast %44 : vector<8x16xbf16> to vector<1x8x16xbf16>
    tpu.vector_store %arg7[%c3_37, %c8_38, %c0_39], %47 {strides = array<i32>} : memref<4x16x16xbf16, #tpu.memory_space<vmem>>, vector<1x8x16xbf16>,
    %cst = arith.constant 0.000000e+00 : f32
    %48 = vector.broadcast %cst : f32 to vector<4x8x16xf32>
    %c0_40 = arith.constant 0 : index
    %c0_41 = arith.constant 0 : index
    %c0_42 = arith.constant 0 : index
    %49 = vector.load %arg8[%c0_40, %c0_41, %c0_42] : memref<4x8x16xf32, #tpu.memory_space<vmem>>, vector<4x8x16xf32>
    tpu.vector_store %arg8[%c0_40, %c0_41, %c0_42], %48 {strides = array<i32>} : memref<4x8x16xf32, #tpu.memory_space<vmem>>, vector<4x8x16xf32>,
    %c0_43 = arith.constant 0 : index
    %c0_44 = arith.constant 0 : index
    %c0_45 = arith.constant 0 : index
    %50 = vector.load %arg8[%c0_43, %c0_44, %c0_45] : memref<4x8x16xf32, #tpu.memory_space<vmem>>, vector<1x8x16xf32>
    %51 = vector.shape_cast %50 : vector<1x8x16xf32> to vector<8x16xf32>
    %c0_46 = arith.constant 0 : index
    %c0_47 = arith.constant 0 : index
    %c0_48 = arith.constant 0 : index
    %52 = vector.load %arg7[%c0_46, %c0_47, %c0_48] : memref<4x16x16xbf16, #tpu.memory_space<vmem>>, vector<1x8x16xbf16>
    %53 = vector.shape_cast %52 : vector<1x8x16xbf16> to vector<8x16xbf16>
    %c0_49 = arith.constant 0 : index
    %c0_50 = arith.constant 0 : index
    %c0_51 = arith.constant 0 : index
    %c0_52 = arith.constant 0 : index
    %54 = vector.load %arg4[%c0_49, %c0_50, %c0_51, %c0_52] : memref<5x4x16x16xbf16, #tpu.memory_space<vmem>>, vector<1x1x16x16xbf16>
    %55 = vector.shape_cast %54 : vector<1x1x16x16xbf16> to vector<16x16xbf16>
    %cst_53 = arith.constant dense<0.000000e+00> : vector<8x16xf32>
    %56 = tpu.matmul %53, %55, %cst_53 {dimension_numbers = #tpu.dot_dimension_numbers<[1], [0], [0], [1], [0, 0, 1, 1], [], []>} : vector<8x16xbf16>, vector<16x16xbf16>, vector<8x16xf32> -> vector<8x16xf32>
    %57 = arith.addf %51, %56 : vector<8x16xf32>
    %c0_54 = arith.constant 0 : index
    %c0_55 = arith.constant 0 : index
    %c0_56 = arith.constant 0 : index
    %58 = vector.load %arg8[%c0_54, %c0_55, %c0_56] : memref<4x8x16xf32, #tpu.memory_space<vmem>>, vector<1x8x16xf32>
    %59 = vector.shape_cast %58 : vector<1x8x16xf32> to vector<8x16xf32>
    %60 = vector.shape_cast %57 : vector<8x16xf32> to vector<1x8x16xf32>
    tpu.vector_store %arg8[%c0_54, %c0_55, %c0_56], %60 {strides = array<i32>} : memref<4x8x16xf32, #tpu.memory_space<vmem>>, vector<1x8x16xf32>,
    %c1_57 = arith.constant 1 : index
    %c0_58 = arith.constant 0 : index
    %c0_59 = arith.constant 0 : index
    %61 = vector.load %arg8[%c1_57, %c0_58, %c0_59] : memref<4x8x16xf32, #tpu.memory_space<vmem>>, vector<1x8x16xf32>
    %62 = vector.shape_cast %61 : vector<1x8x16xf32> to vector<8x16xf32>
    %c1_60 = arith.constant 1 : index
    %c0_61 = arith.constant 0 : index
    %c0_62 = arith.constant 0 : index
    %63 = vector.load %arg7[%c1_60, %c0_61, %c0_62] : memref<4x16x16xbf16, #tpu.memory_space<vmem>>, vector<1x8x16xbf16>
    %64 = vector.shape_cast %63 : vector<1x8x16xbf16> to vector<8x16xbf16>
    %c0_63 = arith.constant 0 : index
    %c1_64 = arith.constant 1 : index
    %c0_65 = arith.constant 0 : index
    %c0_66 = arith.constant 0 : index
    %65 = vector.load %arg4[%c0_63, %c1_64, %c0_65, %c0_66] : memref<5x4x16x16xbf16, #tpu.memory_space<vmem>>, vector<1x1x16x16xbf16>
    %66 = vector.shape_cast %65 : vector<1x1x16x16xbf16> to vector<16x16xbf16>
    %cst_67 = arith.constant dense<0.000000e+00> : vector<8x16xf32>
    %67 = tpu.matmul %64, %66, %cst_67 {dimension_numbers = #tpu.dot_dimension_numbers<[1], [0], [0], [1], [0, 0, 1, 1], [], []>} : vector<8x16xbf16>, vector<16x16xbf16>, vector<8x16xf32> -> vector<8x16xf32>
    %68 = arith.addf %62, %67 : vector<8x16xf32>
    %c1_68 = arith.constant 1 : index
    %c0_69 = arith.constant 0 : index
    %c0_70 = arith.constant 0 : index
    %69 = vector.load %arg8[%c1_68, %c0_69, %c0_70] : memref<4x8x16xf32, #tpu.memory_space<vmem>>, vector<1x8x16xf32>
    %70 = vector.shape_cast %69 : vector<1x8x16xf32> to vector<8x16xf32>
    %71 = vector.shape_cast %68 : vector<8x16xf32> to vector<1x8x16xf32>
    tpu.vector_store %arg8[%c1_68, %c0_69, %c0_70], %71 {strides = array<i32>} : memref<4x8x16xf32, #tpu.memory_space<vmem>>, vector<1x8x16xf32>,
    %c2_71 = arith.constant 2 : index
    %c0_72 = arith.constant 0 : index
    %c0_73 = arith.constant 0 : index
    %72 = vector.load %arg8[%c2_71, %c0_72, %c0_73] : memref<4x8x16xf32, #tpu.memory_space<vmem>>, vector<1x8x16xf32>
    %73 = vector.shape_cast %72 : vector<1x8x16xf32> to vector<8x16xf32>
    %c2_74 = arith.constant 2 : index
    %c0_75 = arith.constant 0 : index
    %c0_76 = arith.constant 0 : index
    %74 = vector.load %arg7[%c2_74, %c0_75, %c0_76] : memref<4x16x16xbf16, #tpu.memory_space<vmem>>, vector<1x8x16xbf16>
    %75 = vector.shape_cast %74 : vector<1x8x16xbf16> to vector<8x16xbf16>
    %c0_77 = arith.constant 0 : index
    %c2_78 = arith.constant 2 : index
    %c0_79 = arith.constant 0 : index
    %c0_80 = arith.constant 0 : index
    %76 = vector.load %arg4[%c0_77, %c2_78, %c0_79, %c0_80] : memref<5x4x16x16xbf16, #tpu.memory_space<vmem>>, vector<1x1x16x16xbf16>
    %77 = vector.shape_cast %76 : vector<1x1x16x16xbf16> to vector<16x16xbf16>
    %cst_81 = arith.constant dense<0.000000e+00> : vector<8x16xf32>
    %78 = tpu.matmul %75, %77, %cst_81 {dimension_numbers = #tpu.dot_dimension_numbers<[1], [0], [0], [1], [0, 0, 1, 1], [], []>} : vector<8x16xbf16>, vector<16x16xbf16>, vector<8x16xf32> -> vector<8x16xf32>
    %79 = arith.addf %73, %78 : vector<8x16xf32>
    %c2_82 = arith.constant 2 : index
    %c0_83 = arith.constant 0 : index
    %c0_84 = arith.constant 0 : index
    %80 = vector.load %arg8[%c2_82, %c0_83, %c0_84] : memref<4x8x16xf32, #tpu.memory_space<vmem>>, vector<1x8x16xf32>
    %81 = vector.shape_cast %80 : vector<1x8x16xf32> to vector<8x16xf32>
    %82 = vector.shape_cast %79 : vector<8x16xf32> to vector<1x8x16xf32>
    tpu.vector_store %arg8[%c2_82, %c0_83, %c0_84], %82 {strides = array<i32>} : memref<4x8x16xf32, #tpu.memory_space<vmem>>, vector<1x8x16xf32>,
    %c3_85 = arith.constant 3 : index
    %c0_86 = arith.constant 0 : index
    %c0_87 = arith.constant 0 : index
    %83 = vector.load %arg8[%c3_85, %c0_86, %c0_87] : memref<4x8x16xf32, #tpu.memory_space<vmem>>, vector<1x8x16xf32>
    %84 = vector.shape_cast %83 : vector<1x8x16xf32> to vector<8x16xf32>
    %c3_88 = arith.constant 3 : index
    %c0_89 = arith.constant 0 : index
    %c0_90 = arith.constant 0 : index
    %85 = vector.load %arg7[%c3_88, %c0_89, %c0_90] : memref<4x16x16xbf16, #tpu.memory_space<vmem>>, vector<1x8x16xbf16>
    %86 = vector.shape_cast %85 : vector<1x8x16xbf16> to vector<8x16xbf16>
    %c0_91 = arith.constant 0 : index
    %c3_92 = arith.constant 3 : index
    %c0_93 = arith.constant 0 : index
    %c0_94 = arith.constant 0 : index
    %87 = vector.load %arg4[%c0_91, %c3_92, %c0_93, %c0_94] : memref<5x4x16x16xbf16, #tpu.memory_space<vmem>>, vector<1x1x16x16xbf16>
    %88 = vector.shape_cast %87 : vector<1x1x16x16xbf16> to vector<16x16xbf16>
    %cst_95 = arith.constant dense<0.000000e+00> : vector<8x16xf32>
    %89 = tpu.matmul %86, %88, %cst_95 {dimension_numbers = #tpu.dot_dimension_numbers<[1], [0], [0], [1], [0, 0, 1, 1], [], []>} : vector<8x16xbf16>, vector<16x16xbf16>, vector<8x16xf32> -> vector<8x16xf32>
    %90 = arith.addf %84, %89 : vector<8x16xf32>
    %c3_96 = arith.constant 3 : index
    %c0_97 = arith.constant 0 : index
    %c0_98 = arith.constant 0 : index
    %91 = vector.load %arg8[%c3_96, %c0_97, %c0_98] : memref<4x8x16xf32, #tpu.memory_space<vmem>>, vector<1x8x16xf32>
    %92 = vector.shape_cast %91 : vector<1x8x16xf32> to vector<8x16xf32>
    %93 = vector.shape_cast %90 : vector<8x16xf32> to vector<1x8x16xf32>
    tpu.vector_store %arg8[%c3_96, %c0_97, %c0_98], %93 {strides = array<i32>} : memref<4x8x16xf32, #tpu.memory_space<vmem>>, vector<1x8x16xf32>,
    %c0_99 = arith.constant 0 : index
    %c0_100 = arith.constant 0 : index
    %c0_101 = arith.constant 0 : index
    %94 = vector.load %arg8[%c0_99, %c0_100, %c0_101] : memref<4x8x16xf32, #tpu.memory_space<vmem>>, vector<1x8x16xf32>
    %95 = vector.shape_cast %94 : vector<1x8x16xf32> to vector<8x16xf32>
    %c0_102 = arith.constant 0 : index
    %c1_103 = arith.constant 1 : index
    %c0_104 = arith.constant 0 : index
    %96 = vector.load %arg7[%c0_102, %c1_103, %c0_104] : memref<4x16x16xbf16, #tpu.memory_space<vmem>>, vector<1x8x16xbf16>
    %97 = vector.shape_cast %96 : vector<1x8x16xbf16> to vector<8x16xbf16>
    %c1_105 = arith.constant 1 : index
    %c0_106 = arith.constant 0 : index
    %c0_107 = arith.constant 0 : index
    %c0_108 = arith.constant 0 : index
    %98 = vector.load %arg4[%c1_105, %c0_106, %c0_107, %c0_108] : memref<5x4x16x16xbf16, #tpu.memory_space<vmem>>, vector<1x1x16x16xbf16>
    %99 = vector.shape_cast %98 : vector<1x1x16x16xbf16> to vector<16x16xbf16>
    %cst_109 = arith.constant dense<0.000000e+00> : vector<8x16xf32>
    %100 = tpu.matmul %97, %99, %cst_109 {dimension_numbers = #tpu.dot_dimension_numbers<[1], [0], [0], [1], [0, 0, 1, 1], [], []>} : vector<8x16xbf16>, vector<16x16xbf16>, vector<8x16xf32> -> vector<8x16xf32>
    %101 = arith.addf %95, %100 : vector<8x16xf32>
    %c0_110 = arith.constant 0 : index
    %c0_111 = arith.constant 0 : index
    %c0_112 = arith.constant 0 : index
    %102 = vector.load %arg8[%c0_110, %c0_111, %c0_112] : memref<4x8x16xf32, #tpu.memory_space<vmem>>, vector<1x8x16xf32>
    %103 = vector.shape_cast %102 : vector<1x8x16xf32> to vector<8x16xf32>
    %104 = vector.shape_cast %101 : vector<8x16xf32> to vector<1x8x16xf32>
    tpu.vector_store %arg8[%c0_110, %c0_111, %c0_112], %104 {strides = array<i32>} : memref<4x8x16xf32, #tpu.memory_space<vmem>>, vector<1x8x16xf32>,
    %c1_113 = arith.constant 1 : index
    %c0_114 = arith.constant 0 : index
    %c0_115 = arith.constant 0 : index
    %105 = vector.load %arg8[%c1_113, %c0_114, %c0_115] : memref<4x8x16xf32, #tpu.memory_space<vmem>>, vector<1x8x16xf32>
    %106 = vector.shape_cast %105 : vector<1x8x16xf32> to vector<8x16xf32>
    %c1_116 = arith.constant 1 : index
    %c1_117 = arith.constant 1 : index
    %c0_118 = arith.constant 0 : index
    %107 = vector.load %arg7[%c1_116, %c1_117, %c0_118] : memref<4x16x16xbf16, #tpu.memory_space<vmem>>, vector<1x8x16xbf16>
    %108 = vector.shape_cast %107 : vector<1x8x16xbf16> to vector<8x16xbf16>
    %c1_119 = arith.constant 1 : index
    %c1_120 = arith.constant 1 : index
    %c0_121 = arith.constant 0 : index
    %c0_122 = arith.constant 0 : index
    %109 = vector.load %arg4[%c1_119, %c1_120, %c0_121, %c0_122] : memref<5x4x16x16xbf16, #tpu.memory_space<vmem>>, vector<1x1x16x16xbf16>
    %110 = vector.shape_cast %109 : vector<1x1x16x16xbf16> to vector<16x16xbf16>
    %cst_123 = arith.constant dense<0.000000e+00> : vector<8x16xf32>
    %111 = tpu.matmul %108, %110, %cst_123 {dimension_numbers = #tpu.dot_dimension_numbers<[1], [0], [0], [1], [0, 0, 1, 1], [], []>} : vector<8x16xbf16>, vector<16x16xbf16>, vector<8x16xf32> -> vector<8x16xf32>
    %112 = arith.addf %106, %111 : vector<8x16xf32>
    %c1_124 = arith.constant 1 : index
    %c0_125 = arith.constant 0 : index
    %c0_126 = arith.constant 0 : index
    %113 = vector.load %arg8[%c1_124, %c0_125, %c0_126] : memref<4x8x16xf32, #tpu.memory_space<vmem>>, vector<1x8x16xf32>
    %114 = vector.shape_cast %113 : vector<1x8x16xf32> to vector<8x16xf32>
    %115 = vector.shape_cast %112 : vector<8x16xf32> to vector<1x8x16xf32>
    tpu.vector_store %arg8[%c1_124, %c0_125, %c0_126], %115 {strides = array<i32>} : memref<4x8x16xf32, #tpu.memory_space<vmem>>, vector<1x8x16xf32>,
    %c2_127 = arith.constant 2 : index
    %c0_128 = arith.constant 0 : index
    %c0_129 = arith.constant 0 : index
    %116 = vector.load %arg8[%c2_127, %c0_128, %c0_129] : memref<4x8x16xf32, #tpu.memory_space<vmem>>, vector<1x8x16xf32>
    %117 = vector.shape_cast %116 : vector<1x8x16xf32> to vector<8x16xf32>
    %c2_130 = arith.constant 2 : index
    %c1_131 = arith.constant 1 : index
    %c0_132 = arith.constant 0 : index
    %118 = vector.load %arg7[%c2_130, %c1_131, %c0_132] : memref<4x16x16xbf16, #tpu.memory_space<vmem>>, vector<1x8x16xbf16>
    %119 = vector.shape_cast %118 : vector<1x8x16xbf16> to vector<8x16xbf16>
    %c1_133 = arith.constant 1 : index
    %c2_134 = arith.constant 2 : index
    %c0_135 = arith.constant 0 : index
    %c0_136 = arith.constant 0 : index
    %120 = vector.load %arg4[%c1_133, %c2_134, %c0_135, %c0_136] : memref<5x4x16x16xbf16, #tpu.memory_space<vmem>>, vector<1x1x16x16xbf16>
    %121 = vector.shape_cast %120 : vector<1x1x16x16xbf16> to vector<16x16xbf16>
    %cst_137 = arith.constant dense<0.000000e+00> : vector<8x16xf32>
    %122 = tpu.matmul %119, %121, %cst_137 {dimension_numbers = #tpu.dot_dimension_numbers<[1], [0], [0], [1], [0, 0, 1, 1], [], []>} : vector<8x16xbf16>, vector<16x16xbf16>, vector<8x16xf32> -> vector<8x16xf32>
    %123 = arith.addf %117, %122 : vector<8x16xf32>
    %c2_138 = arith.constant 2 : index
    %c0_139 = arith.constant 0 : index
    %c0_140 = arith.constant 0 : index
    %124 = vector.load %arg8[%c2_138, %c0_139, %c0_140] : memref<4x8x16xf32, #tpu.memory_space<vmem>>, vector<1x8x16xf32>
    %125 = vector.shape_cast %124 : vector<1x8x16xf32> to vector<8x16xf32>
    %126 = vector.shape_cast %123 : vector<8x16xf32> to vector<1x8x16xf32>
    tpu.vector_store %arg8[%c2_138, %c0_139, %c0_140], %126 {strides = array<i32>} : memref<4x8x16xf32, #tpu.memory_space<vmem>>, vector<1x8x16xf32>,
    %c3_141 = arith.constant 3 : index
    %c0_142 = arith.constant 0 : index
    %c0_143 = arith.constant 0 : index
    %127 = vector.load %arg8[%c3_141, %c0_142, %c0_143] : memref<4x8x16xf32, #tpu.memory_space<vmem>>, vector<1x8x16xf32>
    %128 = vector.shape_cast %127 : vector<1x8x16xf32> to vector<8x16xf32>
    %c3_144 = arith.constant 3 : index
    %c1_145 = arith.constant 1 : index
    %c0_146 = arith.constant 0 : index
    %129 = vector.load %arg7[%c3_144, %c1_145, %c0_146] : memref<4x16x16xbf16, #tpu.memory_space<vmem>>, vector<1x8x16xbf16>
    %130 = vector.shape_cast %129 : vector<1x8x16xbf16> to vector<8x16xbf16>
    %c1_147 = arith.constant 1 : index
    %c3_148 = arith.constant 3 : index
    %c0_149 = arith.constant 0 : index
    %c0_150 = arith.constant 0 : index
    %131 = vector.load %arg4[%c1_147, %c3_148, %c0_149, %c0_150] : memref<5x4x16x16xbf16, #tpu.memory_space<vmem>>, vector<1x1x16x16xbf16>
    %132 = vector.shape_cast %131 : vector<1x1x16x16xbf16> to vector<16x16xbf16>
    %cst_151 = arith.constant dense<0.000000e+00> : vector<8x16xf32>
    %133 = tpu.matmul %130, %132, %cst_151 {dimension_numbers = #tpu.dot_dimension_numbers<[1], [0], [0], [1], [0, 0, 1, 1], [], []>} : vector<8x16xbf16>, vector<16x16xbf16>, vector<8x16xf32> -> vector<8x16xf32>
    %134 = arith.addf %128, %133 : vector<8x16xf32>
    %c3_152 = arith.constant 3 : index
    %c0_153 = arith.constant 0 : index
    %c0_154 = arith.constant 0 : index
    %135 = vector.load %arg8[%c3_152, %c0_153, %c0_154] : memref<4x8x16xf32, #tpu.memory_space<vmem>>, vector<1x8x16xf32>
    %136 = vector.shape_cast %135 : vector<1x8x16xf32> to vector<8x16xf32>
    %137 = vector.shape_cast %134 : vector<8x16xf32> to vector<1x8x16xf32>
    tpu.vector_store %arg8[%c3_152, %c0_153, %c0_154], %137 {strides = array<i32>} : memref<4x8x16xf32, #tpu.memory_space<vmem>>, vector<1x8x16xf32>,
    %c0_155 = arith.constant 0 : index
    %c0_156 = arith.constant 0 : index
    %c0_157 = arith.constant 0 : index
    %138 = vector.load %arg8[%c0_155, %c0_156, %c0_157] : memref<4x8x16xf32, #tpu.memory_space<vmem>>, vector<1x8x16xf32>
    %139 = vector.shape_cast %138 : vector<1x8x16xf32> to vector<8x16xf32>
    %c0_158 = arith.constant 0 : index
    %c2_159 = arith.constant 2 : index
    %c0_160 = arith.constant 0 : index
    %140 = vector.load %arg7[%c0_158, %c2_159, %c0_160] : memref<4x16x16xbf16, #tpu.memory_space<vmem>>, vector<1x8x16xbf16>
    %141 = vector.shape_cast %140 : vector<1x8x16xbf16> to vector<8x16xbf16>
    %c2_161 = arith.constant 2 : index
    %c0_162 = arith.constant 0 : index
    %c0_163 = arith.constant 0 : index
    %c0_164 = arith.constant 0 : index
    %142 = vector.load %arg4[%c2_161, %c0_162, %c0_163, %c0_164] : memref<5x4x16x16xbf16, #tpu.memory_space<vmem>>, vector<1x1x16x16xbf16>
    %143 = vector.shape_cast %142 : vector<1x1x16x16xbf16> to vector<16x16xbf16>
    %cst_165 = arith.constant dense<0.000000e+00> : vector<8x16xf32>
    %144 = tpu.matmul %141, %143, %cst_165 {dimension_numbers = #tpu.dot_dimension_numbers<[1], [0], [0], [1], [0, 0, 1, 1], [], []>} : vector<8x16xbf16>, vector<16x16xbf16>, vector<8x16xf32> -> vector<8x16xf32>
    %145 = arith.addf %139, %144 : vector<8x16xf32>
    %c0_166 = arith.constant 0 : index
    %c0_167 = arith.constant 0 : index
    %c0_168 = arith.constant 0 : index
    %146 = vector.load %arg8[%c0_166, %c0_167, %c0_168] : memref<4x8x16xf32, #tpu.memory_space<vmem>>, vector<1x8x16xf32>
    %147 = vector.shape_cast %146 : vector<1x8x16xf32> to vector<8x16xf32>
    %148 = vector.shape_cast %145 : vector<8x16xf32> to vector<1x8x16xf32>
    tpu.vector_store %arg8[%c0_166, %c0_167, %c0_168], %148 {strides = array<i32>} : memref<4x8x16xf32, #tpu.memory_space<vmem>>, vector<1x8x16xf32>,
    %c1_169 = arith.constant 1 : index
    %c0_170 = arith.constant 0 : index
    %c0_171 = arith.constant 0 : index
    %149 = vector.load %arg8[%c1_169, %c0_170, %c0_171] : memref<4x8x16xf32, #tpu.memory_space<vmem>>, vector<1x8x16xf32>
    %150 = vector.shape_cast %149 : vector<1x8x16xf32> to vector<8x16xf32>
    %c1_172 = arith.constant 1 : index
    %c2_173 = arith.constant 2 : index
    %c0_174 = arith.constant 0 : index
    %151 = vector.load %arg7[%c1_172, %c2_173, %c0_174] : memref<4x16x16xbf16, #tpu.memory_space<vmem>>, vector<1x8x16xbf16>
    %152 = vector.shape_cast %151 : vector<1x8x16xbf16> to vector<8x16xbf16>
    %c2_175 = arith.constant 2 : index
    %c1_176 = arith.constant 1 : index
    %c0_177 = arith.constant 0 : index
    %c0_178 = arith.constant 0 : index
    %153 = vector.load %arg4[%c2_175, %c1_176, %c0_177, %c0_178] : memref<5x4x16x16xbf16, #tpu.memory_space<vmem>>, vector<1x1x16x16xbf16>
    %154 = vector.shape_cast %153 : vector<1x1x16x16xbf16> to vector<16x16xbf16>
    %cst_179 = arith.constant dense<0.000000e+00> : vector<8x16xf32>
    %155 = tpu.matmul %152, %154, %cst_179 {dimension_numbers = #tpu.dot_dimension_numbers<[1], [0], [0], [1], [0, 0, 1, 1], [], []>} : vector<8x16xbf16>, vector<16x16xbf16>, vector<8x16xf32> -> vector<8x16xf32>
    %156 = arith.addf %150, %155 : vector<8x16xf32>
    %c1_180 = arith.constant 1 : index
    %c0_181 = arith.constant 0 : index
    %c0_182 = arith.constant 0 : index
    %157 = vector.load %arg8[%c1_180, %c0_181, %c0_182] : memref<4x8x16xf32, #tpu.memory_space<vmem>>, vector<1x8x16xf32>
    %158 = vector.shape_cast %157 : vector<1x8x16xf32> to vector<8x16xf32>
    %159 = vector.shape_cast %156 : vector<8x16xf32> to vector<1x8x16xf32>
    tpu.vector_store %arg8[%c1_180, %c0_181, %c0_182], %159 {strides = array<i32>} : memref<4x8x16xf32, #tpu.memory_space<vmem>>, vector<1x8x16xf32>,
    %c2_183 = arith.constant 2 : index
    %c0_184 = arith.constant 0 : index
    %c0_185 = arith.constant 0 : index
    %160 = vector.load %arg8[%c2_183, %c0_184, %c0_185] : memref<4x8x16xf32, #tpu.memory_space<vmem>>, vector<1x8x16xf32>
    %161 = vector.shape_cast %160 : vector<1x8x16xf32> to vector<8x16xf32>
    %c2_186 = arith.constant 2 : index
    %c2_187 = arith.constant 2 : index
    %c0_188 = arith.constant 0 : index
    %162 = vector.load %arg7[%c2_186, %c2_187, %c0_188] : memref<4x16x16xbf16, #tpu.memory_space<vmem>>, vector<1x8x16xbf16>
    %163 = vector.shape_cast %162 : vector<1x8x16xbf16> to vector<8x16xbf16>
    %c2_189 = arith.constant 2 : index
    %c2_190 = arith.constant 2 : index
    %c0_191 = arith.constant 0 : index
    %c0_192 = arith.constant 0 : index
    %164 = vector.load %arg4[%c2_189, %c2_190, %c0_191, %c0_192] : memref<5x4x16x16xbf16, #tpu.memory_space<vmem>>, vector<1x1x16x16xbf16>
    %165 = vector.shape_cast %164 : vector<1x1x16x16xbf16> to vector<16x16xbf16>
    %cst_193 = arith.constant dense<0.000000e+00> : vector<8x16xf32>
    %166 = tpu.matmul %163, %165, %cst_193 {dimension_numbers = #tpu.dot_dimension_numbers<[1], [0], [0], [1], [0, 0, 1, 1], [], []>} : vector<8x16xbf16>, vector<16x16xbf16>, vector<8x16xf32> -> vector<8x16xf32>
    %167 = arith.addf %161, %166 : vector<8x16xf32>
    %c2_194 = arith.constant 2 : index
    %c0_195 = arith.constant 0 : index
    %c0_196 = arith.constant 0 : index
    %168 = vector.load %arg8[%c2_194, %c0_195, %c0_196] : memref<4x8x16xf32, #tpu.memory_space<vmem>>, vector<1x8x16xf32>
    %169 = vector.shape_cast %168 : vector<1x8x16xf32> to vector<8x16xf32>
    %170 = vector.shape_cast %167 : vector<8x16xf32> to vector<1x8x16xf32>
    tpu.vector_store %arg8[%c2_194, %c0_195, %c0_196], %170 {strides = array<i32>} : memref<4x8x16xf32, #tpu.memory_space<vmem>>, vector<1x8x16xf32>,
    %c3_197 = arith.constant 3 : index
    %c0_198 = arith.constant 0 : index
    %c0_199 = arith.constant 0 : index
    %171 = vector.load %arg8[%c3_197, %c0_198, %c0_199] : memref<4x8x16xf32, #tpu.memory_space<vmem>>, vector<1x8x16xf32>
    %172 = vector.shape_cast %171 : vector<1x8x16xf32> to vector<8x16xf32>
    %c3_200 = arith.constant 3 : index
    %c2_201 = arith.constant 2 : index
    %c0_202 = arith.constant 0 : index
    %173 = vector.load %arg7[%c3_200, %c2_201, %c0_202] : memref<4x16x16xbf16, #tpu.memory_space<vmem>>, vector<1x8x16xbf16>
    %174 = vector.shape_cast %173 : vector<1x8x16xbf16> to vector<8x16xbf16>
    %c2_203 = arith.constant 2 : index
    %c3_204 = arith.constant 3 : index
    %c0_205 = arith.constant 0 : index
    %c0_206 = arith.constant 0 : index
    %175 = vector.load %arg4[%c2_203, %c3_204, %c0_205, %c0_206] : memref<5x4x16x16xbf16, #tpu.memory_space<vmem>>, vector<1x1x16x16xbf16>
    %176 = vector.shape_cast %175 : vector<1x1x16x16xbf16> to vector<16x16xbf16>
    %cst_207 = arith.constant dense<0.000000e+00> : vector<8x16xf32>
    %177 = tpu.matmul %174, %176, %cst_207 {dimension_numbers = #tpu.dot_dimension_numbers<[1], [0], [0], [1], [0, 0, 1, 1], [], []>} : vector<8x16xbf16>, vector<16x16xbf16>, vector<8x16xf32> -> vector<8x16xf32>
    %178 = arith.addf %172, %177 : vector<8x16xf32>
    %c3_208 = arith.constant 3 : index
    %c0_209 = arith.constant 0 : index
    %c0_210 = arith.constant 0 : index
    %179 = vector.load %arg8[%c3_208, %c0_209, %c0_210] : memref<4x8x16xf32, #tpu.memory_space<vmem>>, vector<1x8x16xf32>
    %180 = vector.shape_cast %179 : vector<1x8x16xf32> to vector<8x16xf32>
    %181 = vector.shape_cast %178 : vector<8x16xf32> to vector<1x8x16xf32>
    tpu.vector_store %arg8[%c3_208, %c0_209, %c0_210], %181 {strides = array<i32>} : memref<4x8x16xf32, #tpu.memory_space<vmem>>, vector<1x8x16xf32>,
    %c0_211 = arith.constant 0 : index
    %c0_212 = arith.constant 0 : index
    %c0_213 = arith.constant 0 : index
    %182 = vector.load %arg8[%c0_211, %c0_212, %c0_213] : memref<4x8x16xf32, #tpu.memory_space<vmem>>, vector<1x8x16xf32>
    %183 = vector.shape_cast %182 : vector<1x8x16xf32> to vector<8x16xf32>
    %c0_214 = arith.constant 0 : index
    %c3_215 = arith.constant 3 : index
    %c0_216 = arith.constant 0 : index
    %184 = vector.load %arg7[%c0_214, %c3_215, %c0_216] : memref<4x16x16xbf16, #tpu.memory_space<vmem>>, vector<1x8x16xbf16>
    %185 = vector.shape_cast %184 : vector<1x8x16xbf16> to vector<8x16xbf16>
    %c3_217 = arith.constant 3 : index
    %c0_218 = arith.constant 0 : index
    %c0_219 = arith.constant 0 : index
    %c0_220 = arith.constant 0 : index
    %186 = vector.load %arg4[%c3_217, %c0_218, %c0_219, %c0_220] : memref<5x4x16x16xbf16, #tpu.memory_space<vmem>>, vector<1x1x16x16xbf16>
    %187 = vector.shape_cast %186 : vector<1x1x16x16xbf16> to vector<16x16xbf16>
    %cst_221 = arith.constant dense<0.000000e+00> : vector<8x16xf32>
    %188 = tpu.matmul %185, %187, %cst_221 {dimension_numbers = #tpu.dot_dimension_numbers<[1], [0], [0], [1], [0, 0, 1, 1], [], []>} : vector<8x16xbf16>, vector<16x16xbf16>, vector<8x16xf32> -> vector<8x16xf32>
    %189 = arith.addf %183, %188 : vector<8x16xf32>
    %c0_222 = arith.constant 0 : index
    %c0_223 = arith.constant 0 : index
    %c0_224 = arith.constant 0 : index
    %190 = vector.load %arg8[%c0_222, %c0_223, %c0_224] : memref<4x8x16xf32, #tpu.memory_space<vmem>>, vector<1x8x16xf32>
    %191 = vector.shape_cast %190 : vector<1x8x16xf32> to vector<8x16xf32>
    %192 = vector.shape_cast %189 : vector<8x16xf32> to vector<1x8x16xf32>
    tpu.vector_store %arg8[%c0_222, %c0_223, %c0_224], %192 {strides = array<i32>} : memref<4x8x16xf32, #tpu.memory_space<vmem>>, vector<1x8x16xf32>,
    %c1_225 = arith.constant 1 : index
    %c0_226 = arith.constant 0 : index
    %c0_227 = arith.constant 0 : index
    %193 = vector.load %arg8[%c1_225, %c0_226, %c0_227] : memref<4x8x16xf32, #tpu.memory_space<vmem>>, vector<1x8x16xf32>
    %194 = vector.shape_cast %193 : vector<1x8x16xf32> to vector<8x16xf32>
    %c1_228 = arith.constant 1 : index
    %c3_229 = arith.constant 3 : index
    %c0_230 = arith.constant 0 : index
    %195 = vector.load %arg7[%c1_228, %c3_229, %c0_230] : memref<4x16x16xbf16, #tpu.memory_space<vmem>>, vector<1x8x16xbf16>
    %196 = vector.shape_cast %195 : vector<1x8x16xbf16> to vector<8x16xbf16>
    %c3_231 = arith.constant 3 : index
    %c1_232 = arith.constant 1 : index
    %c0_233 = arith.constant 0 : index
    %c0_234 = arith.constant 0 : index
    %197 = vector.load %arg4[%c3_231, %c1_232, %c0_233, %c0_234] : memref<5x4x16x16xbf16, #tpu.memory_space<vmem>>, vector<1x1x16x16xbf16>
    %198 = vector.shape_cast %197 : vector<1x1x16x16xbf16> to vector<16x16xbf16>
    %cst_235 = arith.constant dense<0.000000e+00> : vector<8x16xf32>
    %199 = tpu.matmul %196, %198, %cst_235 {dimension_numbers = #tpu.dot_dimension_numbers<[1], [0], [0], [1], [0, 0, 1, 1], [], []>} : vector<8x16xbf16>, vector<16x16xbf16>, vector<8x16xf32> -> vector<8x16xf32>
    %200 = arith.addf %194, %199 : vector<8x16xf32>
    %c1_236 = arith.constant 1 : index
    %c0_237 = arith.constant 0 : index
    %c0_238 = arith.constant 0 : index
    %201 = vector.load %arg8[%c1_236, %c0_237, %c0_238] : memref<4x8x16xf32, #tpu.memory_space<vmem>>, vector<1x8x16xf32>
    %202 = vector.shape_cast %201 : vector<1x8x16xf32> to vector<8x16xf32>
    %203 = vector.shape_cast %200 : vector<8x16xf32> to vector<1x8x16xf32>
    tpu.vector_store %arg8[%c1_236, %c0_237, %c0_238], %203 {strides = array<i32>} : memref<4x8x16xf32, #tpu.memory_space<vmem>>, vector<1x8x16xf32>,
    %c2_239 = arith.constant 2 : index
    %c0_240 = arith.constant 0 : index
    %c0_241 = arith.constant 0 : index
    %204 = vector.load %arg8[%c2_239, %c0_240, %c0_241] : memref<4x8x16xf32, #tpu.memory_space<vmem>>, vector<1x8x16xf32>
    %205 = vector.shape_cast %204 : vector<1x8x16xf32> to vector<8x16xf32>
    %c2_242 = arith.constant 2 : index
    %c3_243 = arith.constant 3 : index
    %c0_244 = arith.constant 0 : index
    %206 = vector.load %arg7[%c2_242, %c3_243, %c0_244] : memref<4x16x16xbf16, #tpu.memory_space<vmem>>, vector<1x8x16xbf16>
    %207 = vector.shape_cast %206 : vector<1x8x16xbf16> to vector<8x16xbf16>
    %c3_245 = arith.constant 3 : index
    %c2_246 = arith.constant 2 : index
    %c0_247 = arith.constant 0 : index
    %c0_248 = arith.constant 0 : index
    %208 = vector.load %arg4[%c3_245, %c2_246, %c0_247, %c0_248] : memref<5x4x16x16xbf16, #tpu.memory_space<vmem>>, vector<1x1x16x16xbf16>
    %209 = vector.shape_cast %208 : vector<1x1x16x16xbf16> to vector<16x16xbf16>
    %cst_249 = arith.constant dense<0.000000e+00> : vector<8x16xf32>
    %210 = tpu.matmul %207, %209, %cst_249 {dimension_numbers = #tpu.dot_dimension_numbers<[1], [0], [0], [1], [0, 0, 1, 1], [], []>} : vector<8x16xbf16>, vector<16x16xbf16>, vector<8x16xf32> -> vector<8x16xf32>
    %211 = arith.addf %205, %210 : vector<8x16xf32>
    %c2_250 = arith.constant 2 : index
    %c0_251 = arith.constant 0 : index
    %c0_252 = arith.constant 0 : index
    %212 = vector.load %arg8[%c2_250, %c0_251, %c0_252] : memref<4x8x16xf32, #tpu.memory_space<vmem>>, vector<1x8x16xf32>
    %213 = vector.shape_cast %212 : vector<1x8x16xf32> to vector<8x16xf32>
    %214 = vector.shape_cast %211 : vector<8x16xf32> to vector<1x8x16xf32>
    tpu.vector_store %arg8[%c2_250, %c0_251, %c0_252], %214 {strides = array<i32>} : memref<4x8x16xf32, #tpu.memory_space<vmem>>, vector<1x8x16xf32>,
    %c3_253 = arith.constant 3 : index
    %c0_254 = arith.constant 0 : index
    %c0_255 = arith.constant 0 : index
    %215 = vector.load %arg8[%c3_253, %c0_254, %c0_255] : memref<4x8x16xf32, #tpu.memory_space<vmem>>, vector<1x8x16xf32>
    %216 = vector.shape_cast %215 : vector<1x8x16xf32> to vector<8x16xf32>
    %c3_256 = arith.constant 3 : index
    %c3_257 = arith.constant 3 : index
    %c0_258 = arith.constant 0 : index
    %217 = vector.load %arg7[%c3_256, %c3_257, %c0_258] : memref<4x16x16xbf16, #tpu.memory_space<vmem>>, vector<1x8x16xbf16>
    %218 = vector.shape_cast %217 : vector<1x8x16xbf16> to vector<8x16xbf16>
    %c3_259 = arith.constant 3 : index
    %c3_260 = arith.constant 3 : index
    %c0_261 = arith.constant 0 : index
    %c0_262 = arith.constant 0 : index
    %219 = vector.load %arg4[%c3_259, %c3_260, %c0_261, %c0_262] : memref<5x4x16x16xbf16, #tpu.memory_space<vmem>>, vector<1x1x16x16xbf16>
    %220 = vector.shape_cast %219 : vector<1x1x16x16xbf16> to vector<16x16xbf16>
    %cst_263 = arith.constant dense<0.000000e+00> : vector<8x16xf32>
    %221 = tpu.matmul %218, %220, %cst_263 {dimension_numbers = #tpu.dot_dimension_numbers<[1], [0], [0], [1], [0, 0, 1, 1], [], []>} : vector<8x16xbf16>, vector<16x16xbf16>, vector<8x16xf32> -> vector<8x16xf32>
    %222 = arith.addf %216, %221 : vector<8x16xf32>
    %c3_264 = arith.constant 3 : index
    %c0_265 = arith.constant 0 : index
    %c0_266 = arith.constant 0 : index
    %223 = vector.load %arg8[%c3_264, %c0_265, %c0_266] : memref<4x8x16xf32, #tpu.memory_space<vmem>>, vector<1x8x16xf32>
    %224 = vector.shape_cast %223 : vector<1x8x16xf32> to vector<8x16xf32>
    %225 = vector.shape_cast %222 : vector<8x16xf32> to vector<1x8x16xf32>
    tpu.vector_store %arg8[%c3_264, %c0_265, %c0_266], %225 {strides = array<i32>} : memref<4x8x16xf32, #tpu.memory_space<vmem>>, vector<1x8x16xf32>,
    %c0_267 = arith.constant 0 : index
    %c0_268 = arith.constant 0 : index
    %c0_269 = arith.constant 0 : index
    %226 = vector.load %arg8[%c0_267, %c0_268, %c0_269] : memref<4x8x16xf32, #tpu.memory_space<vmem>>, vector<1x8x16xf32>
    %227 = vector.shape_cast %226 : vector<1x8x16xf32> to vector<8x16xf32>
    %c0_270 = arith.constant 0 : index
    %c4 = arith.constant 4 : index
    %c0_271 = arith.constant 0 : index
    %228 = vector.load %arg7[%c0_270, %c4, %c0_271] : memref<4x16x16xbf16, #tpu.memory_space<vmem>>, vector<1x8x16xbf16>
    %229 = vector.shape_cast %228 : vector<1x8x16xbf16> to vector<8x16xbf16>
    %c4_272 = arith.constant 4 : index
    %c0_273 = arith.constant 0 : index
    %c0_274 = arith.constant 0 : index
    %c0_275 = arith.constant 0 : index
    %230 = vector.load %arg4[%c4_272, %c0_273, %c0_274, %c0_275] : memref<5x4x16x16xbf16, #tpu.memory_space<vmem>>, vector<1x1x16x16xbf16>
    %231 = vector.shape_cast %230 : vector<1x1x16x16xbf16> to vector<16x16xbf16>
    %cst_276 = arith.constant dense<0.000000e+00> : vector<8x16xf32>
    %232 = tpu.matmul %229, %231, %cst_276 {dimension_numbers = #tpu.dot_dimension_numbers<[1], [0], [0], [1], [0, 0, 1, 1], [], []>} : vector<8x16xbf16>, vector<16x16xbf16>, vector<8x16xf32> -> vector<8x16xf32>
    %233 = arith.addf %227, %232 : vector<8x16xf32>
    %c0_277 = arith.constant 0 : index
    %c0_278 = arith.constant 0 : index
    %c0_279 = arith.constant 0 : index
    %234 = vector.load %arg8[%c0_277, %c0_278, %c0_279] : memref<4x8x16xf32, #tpu.memory_space<vmem>>, vector<1x8x16xf32>
    %235 = vector.shape_cast %234 : vector<1x8x16xf32> to vector<8x16xf32>
    %236 = vector.shape_cast %233 : vector<8x16xf32> to vector<1x8x16xf32>
    tpu.vector_store %arg8[%c0_277, %c0_278, %c0_279], %236 {strides = array<i32>} : memref<4x8x16xf32, #tpu.memory_space<vmem>>, vector<1x8x16xf32>,
    %c1_280 = arith.constant 1 : index
    %c0_281 = arith.constant 0 : index
    %c0_282 = arith.constant 0 : index
    %237 = vector.load %arg8[%c1_280, %c0_281, %c0_282] : memref<4x8x16xf32, #tpu.memory_space<vmem>>, vector<1x8x16xf32>
    %238 = vector.shape_cast %237 : vector<1x8x16xf32> to vector<8x16xf32>
    %c1_283 = arith.constant 1 : index
    %c4_284 = arith.constant 4 : index
    %c0_285 = arith.constant 0 : index
    %239 = vector.load %arg7[%c1_283, %c4_284, %c0_285] : memref<4x16x16xbf16, #tpu.memory_space<vmem>>, vector<1x8x16xbf16>
    %240 = vector.shape_cast %239 : vector<1x8x16xbf16> to vector<8x16xbf16>
    %c4_286 = arith.constant 4 : index
    %c1_287 = arith.constant 1 : index
    %c0_288 = arith.constant 0 : index
    %c0_289 = arith.constant 0 : index
    %241 = vector.load %arg4[%c4_286, %c1_287, %c0_288, %c0_289] : memref<5x4x16x16xbf16, #tpu.memory_space<vmem>>, vector<1x1x16x16xbf16>
    %242 = vector.shape_cast %241 : vector<1x1x16x16xbf16> to vector<16x16xbf16>
    %cst_290 = arith.constant dense<0.000000e+00> : vector<8x16xf32>
    %243 = tpu.matmul %240, %242, %cst_290 {dimension_numbers = #tpu.dot_dimension_numbers<[1], [0], [0], [1], [0, 0, 1, 1], [], []>} : vector<8x16xbf16>, vector<16x16xbf16>, vector<8x16xf32> -> vector<8x16xf32>
    %244 = arith.addf %238, %243 : vector<8x16xf32>
    %c1_291 = arith.constant 1 : index
    %c0_292 = arith.constant 0 : index
    %c0_293 = arith.constant 0 : index
    %245 = vector.load %arg8[%c1_291, %c0_292, %c0_293] : memref<4x8x16xf32, #tpu.memory_space<vmem>>, vector<1x8x16xf32>
    %246 = vector.shape_cast %245 : vector<1x8x16xf32> to vector<8x16xf32>
    %247 = vector.shape_cast %244 : vector<8x16xf32> to vector<1x8x16xf32>
    tpu.vector_store %arg8[%c1_291, %c0_292, %c0_293], %247 {strides = array<i32>} : memref<4x8x16xf32, #tpu.memory_space<vmem>>, vector<1x8x16xf32>,
    %c2_294 = arith.constant 2 : index
    %c0_295 = arith.constant 0 : index
    %c0_296 = arith.constant 0 : index
    %248 = vector.load %arg8[%c2_294, %c0_295, %c0_296] : memref<4x8x16xf32, #tpu.memory_space<vmem>>, vector<1x8x16xf32>
    %249 = vector.shape_cast %248 : vector<1x8x16xf32> to vector<8x16xf32>
    %c2_297 = arith.constant 2 : index
    %c4_298 = arith.constant 4 : index
    %c0_299 = arith.constant 0 : index
    %250 = vector.load %arg7[%c2_297, %c4_298, %c0_299] : memref<4x16x16xbf16, #tpu.memory_space<vmem>>, vector<1x8x16xbf16>
    %251 = vector.shape_cast %250 : vector<1x8x16xbf16> to vector<8x16xbf16>
    %c4_300 = arith.constant 4 : index
    %c2_301 = arith.constant 2 : index
    %c0_302 = arith.constant 0 : index
    %c0_303 = arith.constant 0 : index
    %252 = vector.load %arg4[%c4_300, %c2_301, %c0_302, %c0_303] : memref<5x4x16x16xbf16, #tpu.memory_space<vmem>>, vector<1x1x16x16xbf16>
    %253 = vector.shape_cast %252 : vector<1x1x16x16xbf16> to vector<16x16xbf16>
    %cst_304 = arith.constant dense<0.000000e+00> : vector<8x16xf32>
    %254 = tpu.matmul %251, %253, %cst_304 {dimension_numbers = #tpu.dot_dimension_numbers<[1], [0], [0], [1], [0, 0, 1, 1], [], []>} : vector<8x16xbf16>, vector<16x16xbf16>, vector<8x16xf32> -> vector<8x16xf32>
    %255 = arith.addf %249, %254 : vector<8x16xf32>
    %c2_305 = arith.constant 2 : index
    %c0_306 = arith.constant 0 : index
    %c0_307 = arith.constant 0 : index
    %256 = vector.load %arg8[%c2_305, %c0_306, %c0_307] : memref<4x8x16xf32, #tpu.memory_space<vmem>>, vector<1x8x16xf32>
    %257 = vector.shape_cast %256 : vector<1x8x16xf32> to vector<8x16xf32>
    %258 = vector.shape_cast %255 : vector<8x16xf32> to vector<1x8x16xf32>
    tpu.vector_store %arg8[%c2_305, %c0_306, %c0_307], %258 {strides = array<i32>} : memref<4x8x16xf32, #tpu.memory_space<vmem>>, vector<1x8x16xf32>,
    %c3_308 = arith.constant 3 : index
    %c0_309 = arith.constant 0 : index
    %c0_310 = arith.constant 0 : index
    %259 = vector.load %arg8[%c3_308, %c0_309, %c0_310] : memref<4x8x16xf32, #tpu.memory_space<vmem>>, vector<1x8x16xf32>
    %260 = vector.shape_cast %259 : vector<1x8x16xf32> to vector<8x16xf32>
    %c3_311 = arith.constant 3 : index
    %c4_312 = arith.constant 4 : index
    %c0_313 = arith.constant 0 : index
    %261 = vector.load %arg7[%c3_311, %c4_312, %c0_313] : memref<4x16x16xbf16, #tpu.memory_space<vmem>>, vector<1x8x16xbf16>
    %262 = vector.shape_cast %261 : vector<1x8x16xbf16> to vector<8x16xbf16>
    %c4_314 = arith.constant 4 : index
    %c3_315 = arith.constant 3 : index
    %c0_316 = arith.constant 0 : index
    %c0_317 = arith.constant 0 : index
    %263 = vector.load %arg4[%c4_314, %c3_315, %c0_316, %c0_317] : memref<5x4x16x16xbf16, #tpu.memory_space<vmem>>, vector<1x1x16x16xbf16>
    %264 = vector.shape_cast %263 : vector<1x1x16x16xbf16> to vector<16x16xbf16>
    %cst_318 = arith.constant dense<0.000000e+00> : vector<8x16xf32>
    %265 = tpu.matmul %262, %264, %cst_318 {dimension_numbers = #tpu.dot_dimension_numbers<[1], [0], [0], [1], [0, 0, 1, 1], [], []>} : vector<8x16xbf16>, vector<16x16xbf16>, vector<8x16xf32> -> vector<8x16xf32>
    %266 = arith.addf %260, %265 : vector<8x16xf32>
    %c3_319 = arith.constant 3 : index
    %c0_320 = arith.constant 0 : index
    %c0_321 = arith.constant 0 : index
    %267 = vector.load %arg8[%c3_319, %c0_320, %c0_321] : memref<4x8x16xf32, #tpu.memory_space<vmem>>, vector<1x8x16xf32>
    %268 = vector.shape_cast %267 : vector<1x8x16xf32> to vector<8x16xf32>
    %269 = vector.shape_cast %266 : vector<8x16xf32> to vector<1x8x16xf32>
    tpu.vector_store %arg8[%c3_319, %c0_320, %c0_321], %269 {strides = array<i32>} : memref<4x8x16xf32, #tpu.memory_space<vmem>>, vector<1x8x16xf32>,
    %c0_322 = arith.constant 0 : index
    %c0_323 = arith.constant 0 : index
    %c0_324 = arith.constant 0 : index
    %270 = vector.load %arg8[%c0_322, %c0_323, %c0_324] : memref<4x8x16xf32, #tpu.memory_space<vmem>>, vector<1x8x16xf32>
    %271 = vector.shape_cast %270 : vector<1x8x16xf32> to vector<8x16xf32>
    %c1_325 = arith.constant 1 : index
    %c0_326 = arith.constant 0 : index
    %c0_327 = arith.constant 0 : index
    %272 = vector.load %arg8[%c1_325, %c0_326, %c0_327] : memref<4x8x16xf32, #tpu.memory_space<vmem>>, vector<1x8x16xf32>
    %273 = vector.shape_cast %272 : vector<1x8x16xf32> to vector<8x16xf32>
    %c2_328 = arith.constant 2 : index
    %c0_329 = arith.constant 0 : index
    %c0_330 = arith.constant 0 : index
    %274 = vector.load %arg8[%c2_328, %c0_329, %c0_330] : memref<4x8x16xf32, #tpu.memory_space<vmem>>, vector<1x8x16xf32>
    %275 = vector.shape_cast %274 : vector<1x8x16xf32> to vector<8x16xf32>
    %c3_331 = arith.constant 3 : index
    %c0_332 = arith.constant 0 : index
    %c0_333 = arith.constant 0 : index
    %276 = vector.load %arg8[%c3_331, %c0_332, %c0_333] : memref<4x8x16xf32, #tpu.memory_space<vmem>>, vector<1x8x16xf32>
    %277 = vector.shape_cast %276 : vector<1x8x16xf32> to vector<8x16xf32>
    %278 = tpu.concatenate %271, %273, %275, %277 in 1 : vector<8x16xf32>, vector<8x16xf32>, vector<8x16xf32>, vector<8x16xf32> -> vector<8x64xf32>
    %c0_334 = arith.constant 0 : index
    %c0_335 = arith.constant 0 : index
    %279 = vector.load %arg5[%c0_334, %c0_335] : memref<1x64xf32, #tpu.memory_space<vmem>>, vector<1x64xf32>
    %280 = vector.broadcast %279 : vector<1x64xf32> to vector<8x64xf32>
    %281 = arith.addf %278, %280 : vector<8x64xf32>
    %cst_336 = arith.constant 5.000000e-01 : f32
    %282 = vector.broadcast %cst_336 : f32 to vector<8x64xf32>
    %283 = arith.mulf %282, %281 : vector<8x64xf32>
    %cst_337 = arith.constant 0.707106769 : f32
    %284 = vector.broadcast %cst_337 : f32 to vector<8x64xf32>
    %285 = arith.mulf %281, %284 : vector<8x64xf32>
    %286 = math.erf %285 : vector<8x64xf32>
    %cst_338 = arith.constant 1.000000e+00 : f32
    %287 = vector.broadcast %cst_338 : f32 to vector<8x64xf32>
    %288 = arith.addf %287, %286 : vector<8x64xf32>
    %289 = arith.mulf %283, %288 : vector<8x64xf32>
    %c0_339 = arith.constant 0 : index
    %c2_340 = arith.constant 2 : index
    %c0_341 = arith.constant 0 : index
    %290 = vector.load %arg2[%c0_339, %c2_340, %c0_341] : memref<1x8x64xf32, #tpu.memory_space<vmem>>, vector<1x6x64xf32>
    %291 = vector.shape_cast %290 : vector<1x6x64xf32> to vector<6x64xf32>
    %c0_342 = arith.constant 0 : index
    %c0_343 = arith.constant 0 : index
    %c0_344 = arith.constant 0 : index
    %292 = vector.load %arg3[%c0_342, %c0_343, %c0_344] : memref<1x8x64xf32, #tpu.memory_space<vmem>>, vector<1x2x64xf32>
    %293 = vector.shape_cast %292 : vector<1x2x64xf32> to vector<2x64xf32>
    %294 = tpu.concatenate %291, %293 in 0 : vector<6x64xf32>, vector<2x64xf32> -> vector<8x64xf32>
    %295 = arith.addf %294, %289 : vector<8x64xf32>
    %c0_345 = arith.constant 0 : index
    %c0_346 = arith.constant 0 : index
    %c0_347 = arith.constant 0 : index
    %296 = vector.load %arg6[%c0_345, %c0_346, %c0_347] : memref<1x8x64xf32, #tpu.memory_space<vmem>>, vector<1x8x64xf32>
    %297 = vector.shape_cast %296 : vector<1x8x64xf32> to vector<8x64xf32>
    %298 = vector.shape_cast %295 : vector<8x64xf32> to vector<1x8x64xf32>
    tpu.vector_store %arg6[%c0_345, %c0_346, %c0_347], %298 {strides = array<i32>} : memref<1x8x64xf32, #tpu.memory_space<vmem>>, vector<1x8x64xf32>,
    return
  }
  func.func @transform_0(%arg0: i32, %arg1: i32) -> (i32, i32, i32) {
    %c0_i32 = arith.constant 0 : i32
    %c0_i32_0 = arith.constant 0 : i32
    return %arg0, %arg1, %c0_i32 : i32, i32, i32
  }
  func.func @transform_1(%arg0: i32, %arg1: i32) -> (i32, i32, i32) {
    %c1_i32 = arith.constant 1 : i32
    %0 = arith.addi %arg1, %c1_i32 : i32
    %c1_i32_0 = arith.constant 1 : i32
    %1 = arith.muli %0, %c1_i32_0 : i32
    %c0_i32 = arith.constant 0 : i32
    %c0_i32_1 = arith.constant 0 : i32
    return %arg0, %1, %c0_i32 : i32, i32, i32
  }
  func.func @transform_2(%arg0: i32, %arg1: i32) -> (i32, i32, i32, i32) {
    %c0_i32 = arith.constant 0 : i32
    %c0_i32_0 = arith.constant 0 : i32
    %c0_i32_1 = arith.constant 0 : i32
    %c0_i32_2 = arith.constant 0 : i32
    %c0_i32_3 = arith.constant 0 : i32
    return %c0_i32, %c0_i32_0, %c0_i32_1, %c0_i32_2 : i32, i32, i32, i32
  }
  func.func @transform_3(%arg0: i32, %arg1: i32) -> (i32, i32) {
    %c0_i32 = arith.constant 0 : i32
    %c0_i32_0 = arith.constant 0 : i32
    %c0_i32_1 = arith.constant 0 : i32
    return %c0_i32, %c0_i32_0 : i32, i32
  }
  func.func @transform_4(%arg0: i32, %arg1: i32) -> (i32, i32, i32) {
    %c0_i32 = arith.constant 0 : i32
    %c0_i32_0 = arith.constant 0 : i32
    return %arg0, %arg1, %c0_i32 : i32, i32, i32
  }
}

</mosaic_0001>

<llo_original>
// kernel: tpu_custom_call.1
$region0: #{tpu_custom_call.1}
  #allocation0 [shape = 'u32[]', space=smem, size = 0x4, offset = 0x4, fixed_abs, tag = 'smem constant byte address 0x4 - core index']
  #allocation1 [shape = 'u32[72,128]{1,0:T(1,128)}', space=vmem, size = 0x9000, scoped, tag = 'internal scratch']
  #allocation2 [shape = 'bf16[4,16,16]{2,1,0:T(8,128)(2,1)}', space=vmem, size = 0x4000, scoped, tag = 'scratch operand']
  #allocation3 [shape = 'f32[4,8,16]{2,1,0:T(8,128)}', space=vmem, size = 0x4000, scoped, tag = 'scratch operand']
  %s0 = inlined_call_operand.hbm [shape: f32[2,24,64], index: 0, kind: input, shape index: {}]
  %s1 = inlined_call_operand.hbm [shape: f32[2,24,64], index: 1, kind: input, shape index: {}]
  %s2 = inlined_call_operand.hbm [shape: bf16[5,4,16,16], index: 2, kind: input, shape index: {}]
  %s3 = inlined_call_operand.vmem [shape: f32[1,64], index: 3, kind: input, shape index: {}]
  %s4 = inlined_call_operand.hbm [shape: f32[2,16,64], index: 4, kind: output, shape index: {}]
  %s5 = sld [smem:[#allocation0]]
  $region61: #{tpu_custom_call.1} parent=0
    _
  %s7 = ssub.s32 1, %s5
  %s8 = scalar_select 0, %s7, %s5
  $region1: #{tpu_custom_call.1} parent=0
    #allocation4 [shape = 'u8[8192]{0}', space=vmem, size = 0x2000, scoped, tag = 'input window, operand 0']
    #allocation5 [shape = 's32[2]{0}', space=sflag, size = 0x8, scoped, tag = 'scoped memory for tpu_custom_call.1']
    #allocation6 [shape = 's32[2]{0}', space=sflag, size = 0x8, scoped, tag = 'scoped memory for tpu_custom_call.1']
    #allocation7 [shape = 'u8[8192]{0}', space=vmem, size = 0x2000, scoped, tag = 'input window, operand 1']
    #allocation8 [shape = 's32[2]{0}', space=sflag, size = 0x8, scoped, tag = 'scoped memory for tpu_custom_call.1']
    #allocation9 [shape = 'u8[81920]{0}', space=vmem, size = 0x14000, scoped, tag = 'input window, operand 2, single buffered']
    #allocation10 [shape = 'u8[8192]{0}', space=vmem, size = 0x2000, scoped, tag = 'output window, operand 0']
    %9 = vsyncpa [#allocation5], 0
    %s10 = scalar_lea.sflag [#allocation5], 1
    %11 = vsyncpa %s10, 0
    %12 = vsyncpa [#allocation8], 0
    %s13 = scalar_lea.sflag [#allocation8], 1
    %14 = vsyncpa %s13, 0
    %15 = vsyncpa [#allocation6], 0
    %s16 = scalar_lea.sflag [#allocation6], 1
    %17 = vsyncpa %s16, 0
    loop: start=0, step=1, limit=6
    $region2: #{tpu_custom_call.1} parent=1 // loop_pre_header
      _
    $region3: #{tpu_custom_call.1} parent=1 // loop_header
      %s19 = sphi 0, %s23
      %p20 = scmp.ge.s32.totalorder %s19, 6
      %s26 = sphi 0, %s38
      %s27 = sphi 0, %s34
      %s28 = sphi 0, %s26
      %s29 = sphi 0, %s27
      %s30 = sphi 0, %s28
      %s31 = sphi 0, %s29
      %s43 = sphi 0, %s45
      %s46 = sphi 0, %s43
      %s47 = sphi 0, %s46
      %s63 = sphi 0, %s47
      %s73 = sphi 0, %s75
      %s76 = sphi 0, %s73
      %s77 = sphi 0, %s76
      %s93 = sphi 0, %s77
      %s97 = sphi 0, %s97
      %s99 = sphi 0, %s97
      %s100 = sphi 0, %s99
      %s114 = sphi 0, %s100
      %s118 = sphi 0, %s118
      %s120 = sphi 0, %s118
      %s121 = sphi 0, %s120
      %s135 = sphi 0, %s121
      %s143 = sphi 0, %s145
      %s146 = sphi 0, %s143
      %s147 = sphi 0, %s146
      %s163 = sphi 0, %s147
    $region4: #{tpu_custom_call.1} parent=1 // loop_header_branch
      %22 = sbr.rel (%p20) target = $region8
    $region5: #{tpu_custom_call.1} parent=1 // loop_body
      %s24 = ssub.s32 %s19, 1
      %s25 = ssub.s32 %s19, 2
      %s32 = sadd.s32 1, %s27
      %p33 = scmp.ge.s32.totalorder %s32, 2
      %s34 = scalar_select %p33, 0, %s32
      %s35 = sadd.s32 1, %s26
      %s36 = scalar_select %p33, %s35, %s26
      %p37 = scmp.ge.s32.totalorder %s36, 2
      %s38 = scalar_select %p37, 0, %s36
      %s39 = ssub.s32 %s26, %s38
      %s40 = ssub.s32 %s27, %s34
      %s41 = sor.u32 %s39, %s40
      %p42 = scmp.eq.s32.totalorder %s41, 0
      %s44 = sadd.s32 %s43, 1
      %s45 = scalar_select %p42, %s43, %s44
      %p48 = pneg %p42
      %p49 = scmp.eq.s32.totalorder %s19, 3
      %p50 = por %p48, %p49
      %p51 = scmp.ne.s32.totalorder %s43, %s46
      %p52 = scmp.eq.s32.totalorder %s19, 0
      %p53 = por %p51, %p52
      %p54 = scmp.ne.s32.totalorder %s43, %s46
      %p55 = scmp.eq.s32.totalorder %s24, 3
      %p56 = por %p54, %p55
      %p57 = scmp.ne.s32.totalorder %s46, %s47
      %p58 = scmp.eq.s32.totalorder %s24, 0
      %p59 = por %p57, %p58
      %p60 = scmp.ne.s32.totalorder %s46, %s47
      %p61 = scmp.eq.s32.totalorder %s25, 3
      %p62 = por %p60, %p61
      %p64 = scmp.ne.s32.totalorder %s47, %s63
      %p65 = scmp.eq.s32.totalorder %s25, 0
      %p66 = por %p64, %p65
      %s67 = sadd.s32 %s27, 1
      %s68 = sadd.s32 %s34, 1
      %s69 = ssub.s32 %s26, %s38
      %s70 = ssub.s32 %s67, %s68
      %s71 = sor.u32 %s69, %s70
      %p72 = scmp.eq.s32.totalorder %s71, 0
      %s74 = sadd.s32 %s73, 1
      %s75 = scalar_select %p72, %s73, %s74
      %p78 = pneg %p72
      %p79 = scmp.eq.s32.totalorder %s19, 3
      %p80 = por %p78, %p79
      %p81 = scmp.ne.s32.totalorder %s73, %s76
      %p82 = scmp.eq.s32.totalorder %s19, 0
      %p83 = por %p81, %p82
      %p84 = scmp.ne.s32.totalorder %s73, %s76
      %p85 = scmp.eq.s32.totalorder %s24, 3
      %p86 = por %p84, %p85
      %p87 = scmp.ne.s32.totalorder %s76, %s77
      %p88 = scmp.eq.s32.totalorder %s24, 0
      %p89 = por %p87, %p88
      %p90 = scmp.ne.s32.totalorder %s76, %s77
      %p91 = scmp.eq.s32.totalorder %s25, 3
      %p92 = por %p90, %p91
      %p94 = scmp.ne.s32.totalorder %s77, %s93
      %p95 = scmp.eq.s32.totalorder %s25, 0
      %p96 = por %p94, %p95
      %s98 = sadd.s32 %s97, 1
      %p101 = scmp.eq.s32.totalorder %s19, 3
      %p102 = scmp.ne.s32.totalorder %s97, %s99
      %p103 = scmp.eq.s32.totalorder %s19, 0
      %p104 = por %p102, %p103
      %p105 = scmp.ne.s32.totalorder %s97, %s99
      %p106 = scmp.eq.s32.totalorder %s24, 3
      %p107 = por %p105, %p106
      %p108 = scmp.ne.s32.totalorder %s99, %s100
      %p109 = scmp.eq.s32.totalorder %s24, 0
      %p110 = por %p108, %p109
      %p111 = scmp.ne.s32.totalorder %s99, %s100
      %p112 = scmp.eq.s32.totalorder %s25, 3
      %p113 = por %p111, %p112
      %p115 = scmp.ne.s32.totalorder %s100, %s114
      %p116 = scmp.eq.s32.totalorder %s25, 0
      %p117 = por %p115, %p116
      %s119 = sadd.s32 %s118, 1
      %p122 = scmp.eq.s32.totalorder %s19, 3
      %p123 = scmp.ne.s32.totalorder %s118, %s120
      %p124 = scmp.eq.s32.totalorder %s19, 0
      %p125 = por %p123, %p124
      %p126 = scmp.ne.s32.totalorder %s118, %s120
      %p127 = scmp.eq.s32.totalorder %s24, 3
      %p128 = por %p126, %p127
      %p129 = scmp.ne.s32.totalorder %s120, %s121
      %p130 = scmp.eq.s32.totalorder %s24, 0
      %p131 = por %p129, %p130
      %p132 = scmp.ne.s32.totalorder %s120, %s121
      %p133 = scmp.eq.s32.totalorder %s25, 3
      %p134 = por %p132, %p133
      %p136 = scmp.ne.s32.totalorder %s121, %s135
      %p137 = scmp.eq.s32.totalorder %s25, 0
      %p138 = por %p136, %p137
      %s139 = ssub.s32 %s26, %s38
      %s140 = ssub.s32 %s27, %s34
      %s141 = sor.u32 %s139, %s140
      %p142 = scmp.eq.s32.totalorder %s141, 0
      %s144 = sadd.s32 %s143, 1
      %s145 = scalar_select %p142, %s143, %s144
      %p148 = pneg %p142
      %p149 = scmp.eq.s32.totalorder %s19, 3
      %p150 = por %p148, %p149
      %p151 = scmp.ne.s32.totalorder %s143, %s146
      %p152 = scmp.eq.s32.totalorder %s19, 0
      %p153 = por %p151, %p152
      %p154 = scmp.ne.s32.totalorder %s143, %s146
      %p155 = scmp.eq.s32.totalorder %s24, 3
      %p156 = por %p154, %p155
      %p157 = scmp.ne.s32.totalorder %s146, %s147
      %p158 = scmp.eq.s32.totalorder %s24, 0
      %p159 = por %p157, %p158
      %p160 = scmp.ne.s32.totalorder %s146, %s147
      %p161 = scmp.eq.s32.totalorder %s25, 3
      %p162 = por %p160, %p161
      %p164 = scmp.ne.s32.totalorder %s147, %s163
      %p165 = scmp.eq.s32.totalorder %s25, 0
      %p166 = por %p164, %p165
      %p167 = scmp.le.s32.totalorder 1, %s19
      %p168 = scmp.lt.s32.totalorder %s19, 5
      %p169 = pnand %p167, %p168
      %p170 = pneg %p169
      // Predicated region
      $region9: #{tpu_custom_call.1} parent=5 // pred_check
        _
      $region10: #{tpu_custom_call.1} parent=5 // pred_check_branch
        %172 = sbr.rel (%p169) target = $region12
      $region11: #{tpu_custom_call.1} parent=5 // pred_region
        %s173 = ssub.s32 %s19, 1
        // Predicated region
        $region13: #{tpu_custom_call.1} parent=11 // pred_check
          %p174 = pneg %p110
        $region14: #{tpu_custom_call.1} parent=11 // pred_check_branch
          %176 = sbr.rel (%p174) target = $region16
        $region15: #{tpu_custom_call.1} parent=11 // pred_region
          %178 = vsyncadd [#allocation8], 0
          %s179 = sshll.u32 %s2, 4
          %s180 = int_to_ptr.hbm [resolvable:$true] %s179
          %s181 = sshll.u32 [#allocation9], 4
          %s182 = int_to_ptr.vmem [resolvable:$true] %s181
          %187 = dma.hbm_to_vmem [thread:$0]  %s180, 2560, %s182, [#allocation8], 64, 64, 4
        $region16: #{tpu_custom_call.1} parent=11 // pred_fallthru
          _
        // Predicated region
        $region17: #{tpu_custom_call.1} parent=11 // pred_check
          %p188 = pneg %p131
        $region18: #{tpu_custom_call.1} parent=11 // pred_check_branch
          %190 = sbr.rel (%p188) target = $region20
        $region19: #{tpu_custom_call.1} parent=11 // pred_region
          _
        $region20: #{tpu_custom_call.1} parent=11 // pred_fallthru
          _
      $region12: #{tpu_custom_call.1} parent=5 // pred_fallthru
        _
      %p191 = scmp.lt.s32.totalorder %s19, 4
      // Predicated region
      $region21: #{tpu_custom_call.1} parent=5 // pred_check
        %p192 = pneg %p191
      $region22: #{tpu_custom_call.1} parent=5 // pred_check_branch
        %194 = sbr.rel (%p192) target = $region24
      $region23: #{tpu_custom_call.1} parent=5 // pred_region
        // Predicated region
        $region25: #{tpu_custom_call.1} parent=23 // pred_check
          %p195 = pneg %p53
        $region26: #{tpu_custom_call.1} parent=23 // pred_check_branch
          %197 = sbr.rel (%p195) target = $region28
        $region27: #{tpu_custom_call.1} parent=23 // pred_region
          %s198 = sand.u32 %s43, 1
          %s199 = scalar_lea.sflag [#allocation5], %s198
          %s200 = sand.u32 %s43, 1
          %s201 = smul.addr %s200, 8
          %s202 = scalar_lea.vmem [#allocation4], %s201
          %204 = vsyncadd %s199, 0
          %s205 = smul.addr %s26, 3
          %s206 = sadd.s32 %s27, %s205
          %s207 = smul.addr %s206, 8
          %s208 = scalar_lea.hbm %s0, %s207
          %s210 = sshll.u32 %s208, 4
          %s211 = int_to_ptr.hbm [resolvable:$true] %s210
          %s212 = sshll.u32 %s202, 4
          %s213 = int_to_ptr.vmem [resolvable:$true] %s212
          %215 = dma.hbm_to_vmem [thread:$0]  %s211, 128, %s213, %s199
        $region28: #{tpu_custom_call.1} parent=23 // pred_fallthru
          _
        // Predicated region
        $region29: #{tpu_custom_call.1} parent=23 // pred_check
          %p216 = pneg %p83
        $region30: #{tpu_custom_call.1} parent=23 // pred_check_branch
          %218 = sbr.rel (%p216) target = $region32
        $region31: #{tpu_custom_call.1} parent=23 // pred_region
          %s219 = sand.u32 %s19, 1
          %s220 = scalar_lea.sflag [#allocation8], %s219
          %s221 = sand.u32 %s73, 1
          %s222 = smul.addr %s221, 8
          %s223 = scalar_lea.vmem [#allocation7], %s222
          %s224 = sadd.s32 %s27, 1
          %226 = vsyncadd %s220, 0
          %s227 = smul.addr %s26, 3
          %s228 = sadd.s32 %s224, %s227
          %s229 = smul.addr %s228, 8
          %s230 = scalar_lea.hbm %s1, %s229
          %s232 = sshll.u32 %s230, 4
          %s233 = int_to_ptr.hbm [resolvable:$true] %s232
          %s234 = sshll.u32 %s223, 4
          %s235 = int_to_ptr.vmem [resolvable:$true] %s234
          %237 = dma.hbm_to_vmem [thread:$0]  %s233, 128, %s235, %s220
        $region32: #{tpu_custom_call.1} parent=23 // pred_fallthru
          _
      $region24: #{tpu_custom_call.1} parent=5 // pred_fallthru
        _
      %p238 = scmp.le.s32.totalorder 1, %s19
      %p239 = scmp.lt.s32.totalorder %s19, 5
      %p240 = pnand %p238, %p239
      %p241 = pneg %p240
      // Predicated region
      $region33: #{tpu_custom_call.1} parent=5 // pred_check
        _
      $region34: #{tpu_custom_call.1} parent=5 // pred_check_branch
        %243 = sbr.rel (%p240) target = $region36
      $region35: #{tpu_custom_call.1} parent=5 // pred_region
        %s244 = ssub.s32 %s19, 1
        %s245 = sand.u32 %s46, 1
        %s246 = scalar_lea.sflag [#allocation5], %s245
        %s247 = sand.u32 %s46, 1
        %s248 = smul.addr %s247, 8
        %s249 = scalar_lea.vmem [#allocation4], %s248
        // Predicated region
        $region37: #{tpu_custom_call.1} parent=35 // pred_check
          %p250 = pneg %p59
        $region38: #{tpu_custom_call.1} parent=35 // pred_check_branch
          %252 = sbr.rel (%p250) target = $region40
        $region39: #{tpu_custom_call.1} parent=35 // pred_region
          %254 = dma.done %s246, 128
        $region40: #{tpu_custom_call.1} parent=35 // pred_fallthru
          _
        %s255 = sand.u32 %s24, 1
        %s256 = scalar_lea.sflag [#allocation8], %s255
        %s257 = sand.u32 %s76, 1
        %s258 = smul.addr %s257, 8
        %s259 = scalar_lea.vmem [#allocation7], %s258
        // Predicated region
        $region41: #{tpu_custom_call.1} parent=35 // pred_check
          %p260 = pneg %p89
        $region42: #{tpu_custom_call.1} parent=35 // pred_check_branch
          %262 = sbr.rel (%p260) target = $region44
        $region43: #{tpu_custom_call.1} parent=35 // pred_region
          %264 = dma.done %s256, 128
        $region44: #{tpu_custom_call.1} parent=35 // pred_fallthru
          _
        // Predicated region
        $region45: #{tpu_custom_call.1} parent=35 // pred_check
          %p265 = pneg %p110
        $region46: #{tpu_custom_call.1} parent=35 // pred_check_branch
          %267 = sbr.rel (%p265) target = $region48
        $region47: #{tpu_custom_call.1} parent=35 // pred_region
          %269 = dma.done [#allocation8], 2560
        $region48: #{tpu_custom_call.1} parent=35 // pred_fallthru
          _
        %s270 = sand.u32 %s46, 1
        %s271 = scalar_lea.sflag [#allocation5], %s270
        %s272 = sand.u32 %s46, 1
        %s273 = smul.addr %s272, 8
        %s274 = scalar_lea.vmem [#allocation4], %s273
        %p275 = pneg %p59
        %p276 = pneg %p56
        %s277 = sand.u32 %s24, 1
        %s278 = scalar_lea.sflag [#allocation8], %s277
        %s279 = sand.u32 %s76, 1
        %s280 = smul.addr %s279, 8
        %s281 = scalar_lea.vmem [#allocation7], %s280
        %p282 = pneg %p89
        %p283 = pneg %p86
        %p284 = pneg %p110
        %p285 = pneg %p107
        %p286 = pneg %p131
        %p287 = pneg %p128
        %p288 = pneg %p159
        %p289 = pneg %p156
        %s290 = sand.u32 %s146, 1
        %s291 = scalar_lea.sflag [#allocation6], %s290
        %s292 = sand.u32 %s146, 1
        %s293 = smul.addr %s292, 8
        %s294 = scalar_lea.vmem [#allocation10], %s293
        %s295 = sadd.s32 %s29, 1
        %v297 = vld [vmem:[%s249] sm:$0xff]
        %v298 = vpack.c.bf16 %v297, %v297
        %vm299 = vcmask 125952
        %300 = vst.msk [vmem:[#allocation2] sm:$0xf] %vm299, %v298
        %v301 = vld [vmem:[%s259] sm:$0xff]
        %v302 = vpack.c.bf16 %v301, %v301
        %303 = vst.msk [vmem:[#allocation2 + $0x4] sm:$0xf] %vm299, %v302
        %v304 = vld [vmem:[%s249] sm:$0xff]
        %v305 = vpack.c.bf16 %v304, %v304
        %307 = vrot.lane.b32.xlu0 %v305, 112
        %v308 = vpop.permute.xlu0 %307
        %s310 = scalar_lea.vmem [#allocation2], 8
        %311 = vst.msk [vmem:[%s310] sm:$0xf] %vm299, %v308
        %v312 = vld [vmem:[%s259] sm:$0xff]
        %v313 = vpack.c.bf16 %v312, %v312
        %315 = vrot.lane.b32.xlu0 %v313, 112
        %v316 = vpop.permute.xlu0 %315
        %318 = vst.msk [vmem:[%s310 + $0x4] sm:$0xf] %vm299, %v316
        %v319 = vld [vmem:[%s249] sm:$0xff]
        %v320 = vpack.c.bf16 %v319, %v319
        %322 = vrot.lane.b32.xlu0 %v320, 96
        %v323 = vpop.permute.xlu0 %322
        %s325 = scalar_lea.vmem [#allocation2], 16
        %326 = vst.msk [vmem:[%s325] sm:$0xf] %vm299, %v323
        %v327 = vld [vmem:[%s259] sm:$0xff]
        %v328 = vpack.c.bf16 %v327, %v327
        %330 = vrot.lane.b32.xlu0 %v328, 96
        %v331 = vpop.permute.xlu0 %330
        %333 = vst.msk [vmem:[%s325 + $0x4] sm:$0xf] %vm299, %v331
        %v334 = vld [vmem:[%s249] sm:$0xff]
        %v335 = vpack.c.bf16 %v334, %v334
        %337 = vrot.lane.b32.xlu0 %v335, 80
        %v338 = vpop.permute.xlu0 %337
        %s340 = scalar_lea.vmem [#allocation2], 24
        %341 = vst.msk [vmem:[%s340] sm:$0xf] %vm299, %v338
        %v342 = vld [vmem:[%s259] sm:$0xff]
        %v343 = vpack.c.bf16 %v342, %v342
        %345 = vrot.lane.b32.xlu0 %v343, 80
        %v346 = vpop.permute.xlu0 %345
        %348 = vst.msk [vmem:[%s340 + $0x4] sm:$0xf] %vm299, %v346
        %vm349 = vcmask 130048
        %350 = vst.msk [vmem:[#allocation3] sm:$0xff] %vm349, 0.0
        %351 = vst.msk [vmem:[#allocation3 + $0x8] sm:$0xff] %vm349, 0.0
        %352 = vst.msk [vmem:[#allocation3 + $0x10] sm:$0xff] %vm349, 0.0
        %353 = vst.msk [vmem:[#allocation3 + $0x18] sm:$0xff] %vm349, 0.0
        %v354 = vld [vmem:[#allocation3] sm:$0xff]
        %v355 = vld [vmem:[#allocation2] sm:$0xf]
        %v356 = vld [vmem:[#allocation9] sm:$0xf]
        %v357 = vld [vmem:[#allocation9 + $0x4] sm:$0xf]
        %v360 = vunpack.c.l.b16 %v356
        %v361 = vunpack.c.l.b16 %v357
        %v362 = vpack.c.b16 %v361, %v360
        %v365 = vsel %vm349, %v355, 0
        %367 = vmatpush.bf16.msra.mxu0 0
        %368 = vmatpush.bf16.msra.mxu0 0
        %369 = vmatpush.bf16.msra.mxu0 0
        %370 = vmatpush.bf16.msra.mxu0 0
        %371 = vmatpush.bf16.msra.mxu0 0
        %372 = vmatpush.bf16.msra.mxu0 0
        %373 = vmatpush.bf16.msra.mxu0 0
        %374 = vmatpush.bf16.msra.mxu0 %v362
        %375 = vmatmul.bf16.gmra.mxu0 %v365
        %v376 = vpop.f32.mrf.mxu0
        %v377 = vadd.f32 0.0, %v376
        %v378 = vpop.f32.mrf.mxu0
        %379 = vdwg.mxu0
        %v380 = vadd.f32 %v354, %v377
        %381 = vst.msk [vmem:[#allocation3] sm:$0xff] %vm349, %v380
        %s382 = scalar_lea.vmem [#allocation3], 8
        %v383 = vld [vmem:[%s382] sm:$0xff]
        %v384 = vld [vmem:[%s310] sm:$0xf]
        %s385 = scalar_lea.vmem [#allocation9], 8
        %v386 = vld [vmem:[%s385] sm:$0xf]
        %v387 = vld [vmem:[%s385 + $0x4] sm:$0xf]
        %v390 = vunpack.c.l.b16 %v386
        %v391 = vunpack.c.l.b16 %v387
        %v392 = vpack.c.b16 %v391, %v390
        %v395 = vsel %vm349, %v384, 0
        %397 = vmatpush.bf16.msra.mxu0 0
        %398 = vmatpush.bf16.msra.mxu0 0
        %399 = vmatpush.bf16.msra.mxu0 0
        %400 = vmatpush.bf16.msra.mxu0 0
        %401 = vmatpush.bf16.msra.mxu0 0
        %402 = vmatpush.bf16.msra.mxu0 0
        %403 = vmatpush.bf16.msra.mxu0 0
        %404 = vmatpush.bf16.msra.mxu0 %v392
        %405 = vmatmul.bf16.gmra.mxu0 %v395
        %v406 = vpop.f32.mrf.mxu0
        %v407 = vadd.f32 0.0, %v406
        %v408 = vpop.f32.mrf.mxu0
        %409 = vdwg.mxu0
        %v410 = vadd.f32 %v383, %v407
        %411 = vst.msk [vmem:[%s382] sm:$0xff] %vm349, %v410
        %s412 = scalar_lea.vmem [#allocation3], 16
        %v413 = vld [vmem:[%s412] sm:$0xff]
        %v414 = vld [vmem:[%s325] sm:$0xf]
        %s415 = scalar_lea.vmem [#allocation9], 16
        %v416 = vld [vmem:[%s415] sm:$0xf]
        %v417 = vld [vmem:[%s415 + $0x4] sm:$0xf]
        %v420 = vunpack.c.l.b16 %v416
        %v421 = vunpack.c.l.b16 %v417
        %v422 = vpack.c.b16 %v421, %v420
        %v425 = vsel %vm349, %v414, 0
        %427 = vmatpush.bf16.msra.mxu0 0
        %428 = vmatpush.bf16.msra.mxu0 0
        %429 = vmatpush.bf16.msra.mxu0 0
        %430 = vmatpush.bf16.msra.mxu0 0
        %431 = vmatpush.bf16.msra.mxu0 0
        %432 = vmatpush.bf16.msra.mxu0 0
        %433 = vmatpush.bf16.msra.mxu0 0
        %434 = vmatpush.bf16.msra.mxu0 %v422
        %435 = vmatmul.bf16.gmra.mxu0 %v425
        %v436 = vpop.f32.mrf.mxu0
        %v437 = vadd.f32 0.0, %v436
        %v438 = vpop.f32.mrf.mxu0
        %439 = vdwg.mxu0
        %v440 = vadd.f32 %v413, %v437
        %441 = vst.msk [vmem:[%s412] sm:$0xff] %vm349, %v440
        %s442 = scalar_lea.vmem [#allocation3], 24
        %v443 = vld [vmem:[%s442] sm:$0xff]
        %v444 = vld [vmem:[%s340] sm:$0xf]
        %s445 = scalar_lea.vmem [#allocation9], 24
        %v446 = vld [vmem:[%s445] sm:$0xf]
        %v447 = vld [vmem:[%s445 + $0x4] sm:$0xf]
        %v450 = vunpack.c.l.b16 %v446
        %v451 = vunpack.c.l.b16 %v447
        %v452 = vpack.c.b16 %v451, %v450
        %v455 = vsel %vm349, %v444, 0
        %457 = vmatpush.bf16.msra.mxu0 0
        %458 = vmatpush.bf16.msra.mxu0 0
        %459 = vmatpush.bf16.msra.mxu0 0
        %460 = vmatpush.bf16.msra.mxu0 0
        %461 = vmatpush.bf16.msra.mxu0 0
        %462 = vmatpush.bf16.msra.mxu0 0
        %463 = vmatpush.bf16.msra.mxu0 0
        %464 = vmatpush.bf16.msra.mxu0 %v452
        %465 = vmatmul.bf16.gmra.mxu0 %v455
        %v466 = vpop.f32.mrf.mxu0
        %v467 = vadd.f32 0.0, %v466
        %v468 = vpop.f32.mrf.mxu0
        %469 = vdwg.mxu0
        %v470 = vadd.f32 %v443, %v467
        %471 = vst.msk [vmem:[%s442] sm:$0xff] %vm349, %v470
        %v472 = vld [vmem:[#allocation3] sm:$0xff]
        %v473 = vld [vmem:[#allocation2] sm:$0xf]
        %v474 = vld [vmem:[#allocation2 + $0x4] sm:$0x1]
        %s475 = scalar_lea.vmem [#allocation9], 32
        %v476 = vld [vmem:[%s475] sm:$0xf]
        %v477 = vld [vmem:[%s475 + $0x4] sm:$0xf]
        %v480 = vunpack.c.l.b16 %v473
        %v481 = vunpack.c.l.b16 %v474
        %v482 = vpack.c.b16 %v481, %v480
        %v484 = vshrl.u32 %v482, 16
        %v486 = vshll.u32 %v482, 16
        %v488 = vrot.slane %v486, 1
        %v489 = vor.u32 %v484, %v488
        %v492 = vunpack.c.l.b16 %v476
        %v493 = vunpack.c.l.b16 %v477
        %v494 = vpack.c.b16 %v493, %v492
        %v497 = vsel %vm349, %v489, 0
        %499 = vmatpush.bf16.msra.mxu0 0
        %500 = vmatpush.bf16.msra.mxu0 0
        %501 = vmatpush.bf16.msra.mxu0 0
        %502 = vmatpush.bf16.msra.mxu0 0
        %503 = vmatpush.bf16.msra.mxu0 0
        %504 = vmatpush.bf16.msra.mxu0 0
        %505 = vmatpush.bf16.msra.mxu0 0
        %506 = vmatpush.bf16.msra.mxu0 %v494
        %507 = vmatmul.bf16.gmra.mxu0 %v497
        %v508 = vpop.f32.mrf.mxu0
        %v509 = vadd.f32 0.0, %v508
        %v510 = vpop.f32.mrf.mxu0
        %511 = vdwg.mxu0
        %v512 = vadd.f32 %v472, %v509
        %513 = vst.msk [vmem:[#allocation3] sm:$0xff] %vm349, %v512
        %v514 = vld [vmem:[%s382] sm:$0xff]
        %v515 = vld [vmem:[%s310] sm:$0xf]
        %v516 = vld [vmem:[%s310 + $0x4] sm:$0x1]
        %s517 = scalar_lea.vmem [#allocation9], 40
        %v518 = vld [vmem:[%s517] sm:$0xf]
        %v519 = vld [vmem:[%s517 + $0x4] sm:$0xf]
        %v522 = vunpack.c.l.b16 %v515
        %v523 = vunpack.c.l.b16 %v516
        %v524 = vpack.c.b16 %v523, %v522
        %v526 = vshrl.u32 %v524, 16
        %v528 = vshll.u32 %v524, 16
        %v530 = vrot.slane %v528, 1
        %v531 = vor.u32 %v526, %v530
        %v534 = vunpack.c.l.b16 %v518
        %v535 = vunpack.c.l.b16 %v519
        %v536 = vpack.c.b16 %v535, %v534
        %v539 = vsel %vm349, %v531, 0
        %541 = vmatpush.bf16.msra.mxu0 0
        %542 = vmatpush.bf16.msra.mxu0 0
        %543 = vmatpush.bf16.msra.mxu0 0
        %544 = vmatpush.bf16.msra.mxu0 0
        %545 = vmatpush.bf16.msra.mxu0 0
        %546 = vmatpush.bf16.msra.mxu0 0
        %547 = vmatpush.bf16.msra.mxu0 0
        %548 = vmatpush.bf16.msra.mxu0 %v536
        %549 = vmatmul.bf16.gmra.mxu0 %v539
        %v550 = vpop.f32.mrf.mxu0
        %v551 = vadd.f32 0.0, %v550
        %v552 = vpop.f32.mrf.mxu0
        %553 = vdwg.mxu0
        %v554 = vadd.f32 %v514, %v551
        %555 = vst.msk [vmem:[%s382] sm:$0xff] %vm349, %v554
        %v556 = vld [vmem:[%s412] sm:$0xff]
        %v557 = vld [vmem:[%s325] sm:$0xf]
        %v558 = vld [vmem:[%s325 + $0x4] sm:$0x1]
        %s559 = scalar_lea.vmem [#allocation9], 48
        %v560 = vld [vmem:[%s559] sm:$0xf]
        %v561 = vld [vmem:[%s559 + $0x4] sm:$0xf]
        %v564 = vunpack.c.l.b16 %v557
        %v565 = vunpack.c.l.b16 %v558
        %v566 = vpack.c.b16 %v565, %v564
        %v568 = vshrl.u32 %v566, 16
        %v570 = vshll.u32 %v566, 16
        %v572 = vrot.slane %v570, 1
        %v573 = vor.u32 %v568, %v572
        %v576 = vunpack.c.l.b16 %v560
        %v577 = vunpack.c.l.b16 %v561
        %v578 = vpack.c.b16 %v577, %v576
        %v581 = vsel %vm349, %v573, 0
        %583 = vmatpush.bf16.msra.mxu0 0
        %584 = vmatpush.bf16.msra.mxu0 0
        %585 = vmatpush.bf16.msra.mxu0 0
        %586 = vmatpush.bf16.msra.mxu0 0
        %587 = vmatpush.bf16.msra.mxu0 0
        %588 = vmatpush.bf16.msra.mxu0 0
        %589 = vmatpush.bf16.msra.mxu0 0
        %590 = vmatpush.bf16.msra.mxu0 %v578
        %591 = vmatmul.bf16.gmra.mxu0 %v581
        %v592 = vpop.f32.mrf.mxu0
        %v593 = vadd.f32 0.0, %v592
        %v594 = vpop.f32.mrf.mxu0
        %595 = vdwg.mxu0
        %v596 = vadd.f32 %v556, %v593
        %597 = vst.msk [vmem:[%s412] sm:$0xff] %vm349, %v596
        %v598 = vld [vmem:[%s442] sm:$0xff]
        %v599 = vld [vmem:[%s340] sm:$0xf]
        %v600 = vld [vmem:[%s340 + $0x4] sm:$0x1]
        %s601 = scalar_lea.vmem [#allocation9], 56
        %v602 = vld [vmem:[%s601] sm:$0xf]
        %v603 = vld [vmem:[%s601 + $0x4] sm:$0xf]
        %v606 = vunpack.c.l.b16 %v599
        %v607 = vunpack.c.l.b16 %v600
        %v608 = vpack.c.b16 %v607, %v606
        %v610 = vshrl.u32 %v608, 16
        %v612 = vshll.u32 %v608, 16
        %v614 = vrot.slane %v612, 1
        %v615 = vor.u32 %v610, %v614
        %v618 = vunpack.c.l.b16 %v602
        %v619 = vunpack.c.l.b16 %v603
        %v620 = vpack.c.b16 %v619, %v618
        %v623 = vsel %vm349, %v615, 0
        %625 = vmatpush.bf16.msra.mxu0 0
        %626 = vmatpush.bf16.msra.mxu0 0
        %627 = vmatpush.bf16.msra.mxu0 0
        %628 = vmatpush.bf16.msra.mxu0 0
        %629 = vmatpush.bf16.msra.mxu0 0
        %630 = vmatpush.bf16.msra.mxu0 0
        %631 = vmatpush.bf16.msra.mxu0 0
        %632 = vmatpush.bf16.msra.mxu0 %v620
        %633 = vmatmul.bf16.gmra.mxu0 %v623
        %v634 = vpop.f32.mrf.mxu0
        %v635 = vadd.f32 0.0, %v634
        %v636 = vpop.f32.mrf.mxu0
        %637 = vdwg.mxu0
        %v638 = vadd.f32 %v598, %v635
        %639 = vst.msk [vmem:[%s442] sm:$0xff] %vm349, %v638
        %v640 = vld [vmem:[#allocation3] sm:$0xff]
        %v641 = vld [vmem:[#allocation2] sm:$0xe]
        %v642 = vld [vmem:[#allocation2 + $0x4] sm:$0x1]
        %s643 = scalar_lea.vmem [#allocation9], 64
        %v644 = vld [vmem:[%s643] sm:$0xf]
        %v645 = vld [vmem:[%s643 + $0x4] sm:$0xf]
        %v648 = vunpack.c.l.b16 %v641
        %v649 = vunpack.c.l.b16 %v642
        %v650 = vpack.c.b16 %v649, %v648
        %v651 = vrot.slane %v650, 1
        %v654 = vunpack.c.l.b16 %v644
        %v655 = vunpack.c.l.b16 %v645
        %v656 = vpack.c.b16 %v655, %v654
        %v659 = vsel %vm349, %v651, 0
        %661 = vmatpush.bf16.msra.mxu0 0
        %662 = vmatpush.bf16.msra.mxu0 0
        %663 = vmatpush.bf16.msra.mxu0 0
        %664 = vmatpush.bf16.msra.mxu0 0
        %665 = vmatpush.bf16.msra.mxu0 0
        %666 = vmatpush.bf16.msra.mxu0 0
        %667 = vmatpush.bf16.msra.mxu0 0
        %668 = vmatpush.bf16.msra.mxu0 %v656
        %669 = vmatmul.bf16.gmra.mxu0 %v659
        %v670 = vpop.f32.mrf.mxu0
        %v671 = vadd.f32 0.0, %v670
        %v672 = vpop.f32.mrf.mxu0
        %673 = vdwg.mxu0
        %v674 = vadd.f32 %v640, %v671
        %675 = vst.msk [vmem:[#allocation3] sm:$0xff] %vm349, %v674
        %v676 = vld [vmem:[%s382] sm:$0xff]
        %v677 = vld [vmem:[%s310] sm:$0xe]
        %v678 = vld [vmem:[%s310 + $0x4] sm:$0x1]
        %s679 = scalar_lea.vmem [#allocation9], 72
        %v680 = vld [vmem:[%s679] sm:$0xf]
        %v681 = vld [vmem:[%s679 + $0x4] sm:$0xf]
        %v684 = vunpack.c.l.b16 %v677
        %v685 = vunpack.c.l.b16 %v678
        %v686 = vpack.c.b16 %v685, %v684
        %v687 = vrot.slane %v686, 1
        %v690 = vunpack.c.l.b16 %v680
        %v691 = vunpack.c.l.b16 %v681
        %v692 = vpack.c.b16 %v691, %v690
        %v695 = vsel %vm349, %v687, 0
        %697 = vmatpush.bf16.msra.mxu0 0
        %698 = vmatpush.bf16.msra.mxu0 0
        %699 = vmatpush.bf16.msra.mxu0 0
        %700 = vmatpush.bf16.msra.mxu0 0
        %701 = vmatpush.bf16.msra.mxu0 0
        %702 = vmatpush.bf16.msra.mxu0 0
        %703 = vmatpush.bf16.msra.mxu0 0
        %704 = vmatpush.bf16.msra.mxu0 %v692
        %705 = vmatmul.bf16.gmra.mxu0 %v695
        %v706 = vpop.f32.mrf.mxu0
        %v707 = vadd.f32 0.0, %v706
        %v708 = vpop.f32.mrf.mxu0
        %709 = vdwg.mxu0
        %v710 = vadd.f32 %v676, %v707
        %711 = vst.msk [vmem:[%s382] sm:$0xff] %vm349, %v710
        %v712 = vld [vmem:[%s412] sm:$0xff]
        %v713 = vld [vmem:[%s325] sm:$0xe]
        %v714 = vld [vmem:[%s325 + $0x4] sm:$0x1]
        %s715 = scalar_lea.vmem [#allocation9], 80
        %v716 = vld [vmem:[%s715] sm:$0xf]
        %v717 = vld [vmem:[%s715 + $0x4] sm:$0xf]
        %v720 = vunpack.c.l.b16 %v713
        %v721 = vunpack.c.l.b16 %v714
        %v722 = vpack.c.b16 %v721, %v720
        %v723 = vrot.slane %v722, 1
        %v726 = vunpack.c.l.b16 %v716
        %v727 = vunpack.c.l.b16 %v717
        %v728 = vpack.c.b16 %v727, %v726
        %v731 = vsel %vm349, %v723, 0
        %733 = vmatpush.bf16.msra.mxu0 0
        %734 = vmatpush.bf16.msra.mxu0 0
        %735 = vmatpush.bf16.msra.mxu0 0
        %736 = vmatpush.bf16.msra.mxu0 0
        %737 = vmatpush.bf16.msra.mxu0 0
        %738 = vmatpush.bf16.msra.mxu0 0
        %739 = vmatpush.bf16.msra.mxu0 0
        %740 = vmatpush.bf16.msra.mxu0 %v728
        %741 = vmatmul.bf16.gmra.mxu0 %v731
        %v742 = vpop.f32.mrf.mxu0
        %v743 = vadd.f32 0.0, %v742
        %v744 = vpop.f32.mrf.mxu0
        %745 = vdwg.mxu0
        %v746 = vadd.f32 %v712, %v743
        %747 = vst.msk [vmem:[%s412] sm:$0xff] %vm349, %v746
        %v748 = vld [vmem:[%s442] sm:$0xff]
        %v749 = vld [vmem:[%s340] sm:$0xe]
        %v750 = vld [vmem:[%s340 + $0x4] sm:$0x1]
        %s751 = scalar_lea.vmem [#allocation9], 88
        %v752 = vld [vmem:[%s751] sm:$0xf]
        %v753 = vld [vmem:[%s751 + $0x4] sm:$0xf]
        %v756 = vunpack.c.l.b16 %v749
        %v757 = vunpack.c.l.b16 %v750
        %v758 = vpack.c.b16 %v757, %v756
        %v759 = vrot.slane %v758, 1
        %v762 = vunpack.c.l.b16 %v752
        %v763 = vunpack.c.l.b16 %v753
        %v764 = vpack.c.b16 %v763, %v762
        %v767 = vsel %vm349, %v759, 0
        %769 = vmatpush.bf16.msra.mxu0 0
        %770 = vmatpush.bf16.msra.mxu0 0
        %771 = vmatpush.bf16.msra.mxu0 0
        %772 = vmatpush.bf16.msra.mxu0 0
        %773 = vmatpush.bf16.msra.mxu0 0
        %774 = vmatpush.bf16.msra.mxu0 0
        %775 = vmatpush.bf16.msra.mxu0 0
        %776 = vmatpush.bf16.msra.mxu0 %v764
        %777 = vmatmul.bf16.gmra.mxu0 %v767
        %v778 = vpop.f32.mrf.mxu0
        %v779 = vadd.f32 0.0, %v778
        %v780 = vpop.f32.mrf.mxu0
        %781 = vdwg.mxu0
        %v782 = vadd.f32 %v748, %v779
        %783 = vst.msk [vmem:[%s442] sm:$0xff] %vm349, %v782
        %v784 = vld [vmem:[#allocation3] sm:$0xff]
        %v785 = vld [vmem:[#allocation2] sm:$0xe]
        %v786 = vld [vmem:[#allocation2 + $0x4] sm:$0x3]
        %s787 = scalar_lea.vmem [#allocation9], 96
        %v788 = vld [vmem:[%s787] sm:$0xf]
        %v789 = vld [vmem:[%s787 + $0x4] sm:$0xf]
        %v792 = vunpack.c.l.b16 %v785
        %v793 = vunpack.c.l.b16 %v786
        %v794 = vpack.c.b16 %v793, %v792
        %v796 = vshrl.u32 %v794, 16
        %v798 = vrot.slane %v796, 1
        %v799 = vshll.u32 %v794, 16
        %v801 = vrot.slane %v799, 2
        %v802 = vor.u32 %v798, %v801
        %v805 = vunpack.c.l.b16 %v788
        %v806 = vunpack.c.l.b16 %v789
        %v807 = vpack.c.b16 %v806, %v805
        %v810 = vsel %vm349, %v802, 0
        %812 = vmatpush.bf16.msra.mxu0 0
        %813 = vmatpush.bf16.msra.mxu0 0
        %814 = vmatpush.bf16.msra.mxu0 0
        %815 = vmatpush.bf16.msra.mxu0 0
        %816 = vmatpush.bf16.msra.mxu0 0
        %817 = vmatpush.bf16.msra.mxu0 0
        %818 = vmatpush.bf16.msra.mxu0 0
        %819 = vmatpush.bf16.msra.mxu0 %v807
        %820 = vmatmul.bf16.gmra.mxu0 %v810
        %v821 = vpop.f32.mrf.mxu0
        %v822 = vadd.f32 0.0, %v821
        %v823 = vpop.f32.mrf.mxu0
        %824 = vdwg.mxu0
        %v825 = vadd.f32 %v784, %v822
        %826 = vst.msk [vmem:[#allocation3] sm:$0xff] %vm349, %v825
        %v827 = vld [vmem:[%s382] sm:$0xff]
        %v828 = vld [vmem:[%s310] sm:$0xe]
        %v829 = vld [vmem:[%s310 + $0x4] sm:$0x3]
        %s830 = scalar_lea.vmem [#allocation9], 104
        %v831 = vld [vmem:[%s830] sm:$0xf]
        %v832 = vld [vmem:[%s830 + $0x4] sm:$0xf]
        %v835 = vunpack.c.l.b16 %v828
        %v836 = vunpack.c.l.b16 %v829
        %v837 = vpack.c.b16 %v836, %v835
        %v839 = vshrl.u32 %v837, 16
        %v841 = vrot.slane %v839, 1
        %v842 = vshll.u32 %v837, 16
        %v844 = vrot.slane %v842, 2
        %v845 = vor.u32 %v841, %v844
        %v848 = vunpack.c.l.b16 %v831
        %v849 = vunpack.c.l.b16 %v832
        %v850 = vpack.c.b16 %v849, %v848
        %v853 = vsel %vm349, %v845, 0
        %855 = vmatpush.bf16.msra.mxu0 0
        %856 = vmatpush.bf16.msra.mxu0 0
        %857 = vmatpush.bf16.msra.mxu0 0
        %858 = vmatpush.bf16.msra.mxu0 0
        %859 = vmatpush.bf16.msra.mxu0 0
        %860 = vmatpush.bf16.msra.mxu0 0
        %861 = vmatpush.bf16.msra.mxu0 0
        %862 = vmatpush.bf16.msra.mxu0 %v850
        %863 = vmatmul.bf16.gmra.mxu0 %v853
        %v864 = vpop.f32.mrf.mxu0
        %v865 = vadd.f32 0.0, %v864
        %v866 = vpop.f32.mrf.mxu0
        %867 = vdwg.mxu0
        %v868 = vadd.f32 %v827, %v865
        %869 = vst.msk [vmem:[%s382] sm:$0xff] %vm349, %v868
        %v870 = vld [vmem:[%s412] sm:$0xff]
        %v871 = vld [vmem:[%s325] sm:$0xe]
        %v872 = vld [vmem:[%s325 + $0x4] sm:$0x3]
        %s873 = scalar_lea.vmem [#allocation9], 112
        %v874 = vld [vmem:[%s873] sm:$0xf]
        %v875 = vld [vmem:[%s873 + $0x4] sm:$0xf]
        %v878 = vunpack.c.l.b16 %v871
        %v879 = vunpack.c.l.b16 %v872
        %v880 = vpack.c.b16 %v879, %v878
        %v882 = vshrl.u32 %v880, 16
        %v884 = vrot.slane %v882, 1
        %v885 = vshll.u32 %v880, 16
        %v887 = vrot.slane %v885, 2
        %v888 = vor.u32 %v884, %v887
        %v891 = vunpack.c.l.b16 %v874
        %v892 = vunpack.c.l.b16 %v875
        %v893 = vpack.c.b16 %v892, %v891
        %v896 = vsel %vm349, %v888, 0
        %898 = vmatpush.bf16.msra.mxu0 0
        %899 = vmatpush.bf16.msra.mxu0 0
        %900 = vmatpush.bf16.msra.mxu0 0
        %901 = vmatpush.bf16.msra.mxu0 0
        %902 = vmatpush.bf16.msra.mxu0 0
        %903 = vmatpush.bf16.msra.mxu0 0
        %904 = vmatpush.bf16.msra.mxu0 0
        %905 = vmatpush.bf16.msra.mxu0 %v893
        %906 = vmatmul.bf16.gmra.mxu0 %v896
        %v907 = vpop.f32.mrf.mxu0
        %v908 = vadd.f32 0.0, %v907
        %v909 = vpop.f32.mrf.mxu0
        %910 = vdwg.mxu0
        %v911 = vadd.f32 %v870, %v908
        %912 = vst.msk [vmem:[%s412] sm:$0xff] %vm349, %v911
        %v913 = vld [vmem:[%s442] sm:$0xff]
        %v914 = vld [vmem:[%s340] sm:$0xe]
        %v915 = vld [vmem:[%s340 + $0x4] sm:$0x3]
        %s916 = scalar_lea.vmem [#allocation9], 120
        %v917 = vld [vmem:[%s916] sm:$0xf]
        %v918 = vld [vmem:[%s916 + $0x4] sm:$0xf]
        %v921 = vunpack.c.l.b16 %v914
        %v922 = vunpack.c.l.b16 %v915
        %v923 = vpack.c.b16 %v922, %v921
        %v925 = vshrl.u32 %v923, 16
        %v927 = vrot.slane %v925, 1
        %v928 = vshll.u32 %v923, 16
        %v930 = vrot.slane %v928, 2
        %v931 = vor.u32 %v927, %v930
        %v934 = vunpack.c.l.b16 %v917
        %v935 = vunpack.c.l.b16 %v918
        %v936 = vpack.c.b16 %v935, %v934
        %v939 = vsel %vm349, %v931, 0
        %941 = vmatpush.bf16.msra.mxu0 0
        %942 = vmatpush.bf16.msra.mxu0 0
        %943 = vmatpush.bf16.msra.mxu0 0
        %944 = vmatpush.bf16.msra.mxu0 0
        %945 = vmatpush.bf16.msra.mxu0 0
        %946 = vmatpush.bf16.msra.mxu0 0
        %947 = vmatpush.bf16.msra.mxu0 0
        %948 = vmatpush.bf16.msra.mxu0 %v936
        %949 = vmatmul.bf16.gmra.mxu0 %v939
        %v950 = vpop.f32.mrf.mxu0
        %v951 = vadd.f32 0.0, %v950
        %v952 = vpop.f32.mrf.mxu0
        %953 = vdwg.mxu0
        %v954 = vadd.f32 %v913, %v951
        %955 = vst.msk [vmem:[%s442] sm:$0xff] %vm349, %v954
        %v956 = vld [vmem:[#allocation3] sm:$0xff]
        %v957 = vld [vmem:[#allocation2] sm:$0xc]
        %v958 = vld [vmem:[#allocation2 + $0x4] sm:$0x3]
        %s959 = scalar_lea.vmem [#allocation9], 128
        %v960 = vld [vmem:[%s959] sm:$0xf]
        %v961 = vld [vmem:[%s959 + $0x4] sm:$0xf]
        %v964 = vunpack.c.l.b16 %v957
        %v965 = vunpack.c.l.b16 %v958
        %v966 = vpack.c.b16 %v965, %v964
        %v967 = vrot.slane %v966, 2
        %v970 = vunpack.c.l.b16 %v960
        %v971 = vunpack.c.l.b16 %v961
        %v972 = vpack.c.b16 %v971, %v970
        %v975 = vsel %vm349, %v967, 0
        %977 = vmatpush.bf16.msra.mxu0 0
        %978 = vmatpush.bf16.msra.mxu0 0
        %979 = vmatpush.bf16.msra.mxu0 0
        %980 = vmatpush.bf16.msra.mxu0 0
        %981 = vmatpush.bf16.msra.mxu0 0
        %982 = vmatpush.bf16.msra.mxu0 0
        %983 = vmatpush.bf16.msra.mxu0 0
        %984 = vmatpush.bf16.msra.mxu0 %v972
        %985 = vmatmul.bf16.gmra.mxu0 %v975
        %v986 = vpop.f32.mrf.mxu0
        %v987 = vadd.f32 0.0, %v986
        %v988 = vpop.f32.mrf.mxu0
        %989 = vdwg.mxu0
        %v990 = vadd.f32 %v956, %v987
        %991 = vst.msk [vmem:[#allocation3] sm:$0xff] %vm349, %v990
        %v992 = vld [vmem:[%s382] sm:$0xff]
        %v993 = vld [vmem:[%s310] sm:$0xc]
        %v994 = vld [vmem:[%s310 + $0x4] sm:$0x3]
        %s995 = scalar_lea.vmem [#allocation9], 136
        %v996 = vld [vmem:[%s995] sm:$0xf]
        %v997 = vld [vmem:[%s995 + $0x4] sm:$0xf]
        %v1000 = vunpack.c.l.b16 %v993
        %v1001 = vunpack.c.l.b16 %v994
        %v1002 = vpack.c.b16 %v1001, %v1000
        %v1003 = vrot.slane %v1002, 2
        %v1006 = vunpack.c.l.b16 %v996
        %v1007 = vunpack.c.l.b16 %v997
        %v1008 = vpack.c.b16 %v1007, %v1006
        %v1011 = vsel %vm349, %v1003, 0
        %1013 = vmatpush.bf16.msra.mxu0 0
        %1014 = vmatpush.bf16.msra.mxu0 0
        %1015 = vmatpush.bf16.msra.mxu0 0
        %1016 = vmatpush.bf16.msra.mxu0 0
        %1017 = vmatpush.bf16.msra.mxu0 0
        %1018 = vmatpush.bf16.msra.mxu0 0
        %1019 = vmatpush.bf16.msra.mxu0 0
        %1020 = vmatpush.bf16.msra.mxu0 %v1008
        %1021 = vmatmul.bf16.gmra.mxu0 %v1011
        %v1022 = vpop.f32.mrf.mxu0
        %v1023 = vadd.f32 0.0, %v1022
        %v1024 = vpop.f32.mrf.mxu0
        %1025 = vdwg.mxu0
        %v1026 = vadd.f32 %v992, %v1023
        %1027 = vst.msk [vmem:[%s382] sm:$0xff] %vm349, %v1026
        %v1028 = vld [vmem:[%s412] sm:$0xff]
        %v1029 = vld [vmem:[%s325] sm:$0xc]
        %v1030 = vld [vmem:[%s325 + $0x4] sm:$0x3]
        %s1031 = scalar_lea.vmem [#allocation9], 144
        %v1032 = vld [vmem:[%s1031] sm:$0xf]
        %v1033 = vld [vmem:[%s1031 + $0x4] sm:$0xf]
        %v1036 = vunpack.c.l.b16 %v1029
        %v1037 = vunpack.c.l.b16 %v1030
        %v1038 = vpack.c.b16 %v1037, %v1036
        %v1039 = vrot.slane %v1038, 2
        %v1042 = vunpack.c.l.b16 %v1032
        %v1043 = vunpack.c.l.b16 %v1033
        %v1044 = vpack.c.b16 %v1043, %v1042
        %v1047 = vsel %vm349, %v1039, 0
        %1049 = vmatpush.bf16.msra.mxu0 0
        %1050 = vmatpush.bf16.msra.mxu0 0
        %1051 = vmatpush.bf16.msra.mxu0 0
        %1052 = vmatpush.bf16.msra.mxu0 0
        %1053 = vmatpush.bf16.msra.mxu0 0
        %1054 = vmatpush.bf16.msra.mxu0 0
        %1055 = vmatpush.bf16.msra.mxu0 0
        %1056 = vmatpush.bf16.msra.mxu0 %v1044
        %1057 = vmatmul.bf16.gmra.mxu0 %v1047
        %v1058 = vpop.f32.mrf.mxu0
        %v1059 = vadd.f32 0.0, %v1058
        %v1060 = vpop.f32.mrf.mxu0
        %1061 = vdwg.mxu0
        %v1062 = vadd.f32 %v1028, %v1059
        %1063 = vst.msk [vmem:[%s412] sm:$0xff] %vm349, %v1062
        %v1064 = vld [vmem:[%s442] sm:$0xff]
        %v1065 = vld [vmem:[%s340] sm:$0xc]
        %v1066 = vld [vmem:[%s340 + $0x4] sm:$0x3]
        %s1067 = scalar_lea.vmem [#allocation9], 152
        %v1068 = vld [vmem:[%s1067] sm:$0xf]
        %v1069 = vld [vmem:[%s1067 + $0x4] sm:$0xf]
        %v1072 = vunpack.c.l.b16 %v1065
        %v1073 = vunpack.c.l.b16 %v1066
        %v1074 = vpack.c.b16 %v1073, %v1072
        %v1075 = vrot.slane %v1074, 2
        %v1078 = vunpack.c.l.b16 %v1068
        %v1079 = vunpack.c.l.b16 %v1069
        %v1080 = vpack.c.b16 %v1079, %v1078
        %v1083 = vsel %vm349, %v1075, 0
        %1085 = vmatpush.bf16.msra.mxu0 0
        %1086 = vmatpush.bf16.msra.mxu0 0
        %1087 = vmatpush.bf16.msra.mxu0 0
        %1088 = vmatpush.bf16.msra.mxu0 0
        %1089 = vmatpush.bf16.msra.mxu0 0
        %1090 = vmatpush.bf16.msra.mxu0 0
        %1091 = vmatpush.bf16.msra.mxu0 0
        %1092 = vmatpush.bf16.msra.mxu0 %v1080
        %1093 = vmatmul.bf16.gmra.mxu0 %v1083
        %v1094 = vpop.f32.mrf.mxu0
        %v1095 = vadd.f32 0.0, %v1094
        %v1096 = vpop.f32.mrf.mxu0
        %1097 = vdwg.mxu0
        %v1098 = vadd.f32 %v1064, %v1095
        %1099 = vst.msk [vmem:[%s442] sm:$0xff] %vm349, %v1098
        %v1100 = vld [vmem:[#allocation3] sm:$0xff]
        %v1101 = vld [vmem:[%s382] sm:$0xff]
        %v1102 = vld [vmem:[%s412] sm:$0xff]
        %v1103 = vld [vmem:[%s442] sm:$0xff]
        %1105 = vrot.lane.b32.xlu0 %v1101, 16
        %v1106 = vpop.permute.xlu0 %1105
        %1109 = vrot.lane.b32.xlu0 %v1102, 32
        %v1110 = vpop.permute.xlu0 %1109
        %1113 = vrot.lane.b32.xlu0 %v1103, 48
        %v1114 = vpop.permute.xlu0 %1113
        %v1116 = vsel %vm349, %v1100, %v1106
        %vm1117 = vcmask 261120
        %v1118 = vsel %vm1117, %v1116, %v1110
        %vm1119 = vcmask 392192
        %v1120 = vsel %vm1119, %v1118, %v1114
        %v1121 = vld [vmem:[%s3] sm:$0x1]
        %v1123 = vperm.slane %v1121, 0
        %v1125 = vadd.f32 %v1120, %v1123
        %v1126 = vmul.f32 %v1125, 0.5
        %v1127 = vmul.f32 %v1125, 0.70710677
        %v1128 = vmul.f32 %v1127, %v1127
        %v1129 = vmin.f32 16.0, %v1128
        %v1130 = vmul.f32 %v1129, 2.1237322e-06
        %v1131 = vadd.f32 %v1130, 0.00028619796
        %v1132 = vmul.f32 %v1129, %v1131
        %v1133 = vadd.f32 %v1132, 0.0036580483
        %v1134 = vmul.f32 %v1129, %v1133
        %v1135 = vadd.f32 %v1134, 0.05243302
        %v1136 = vmul.f32 %v1129, %v1135
        %v1137 = vadd.f32 %v1136, 0.18741608
        %v1138 = vmul.f32 %v1129, %v1137
        %v1139 = vadd.f32 %v1138, 1.1283791
        %v1140 = vmul.f32 %v1127, %v1139
        %v1141 = vmul.f32 %v1129, 3.8918573e-05
        %v1142 = vadd.f32 %v1141, 0.001143296
        %v1143 = vmul.f32 %v1129, %v1142
        %v1144 = vadd.f32 %v1143, 0.014752088
        %v1145 = vmul.f32 %v1129, %v1144
        %v1146 = vadd.f32 %v1145, 0.112945676
        %v1147 = vmul.f32 %v1129, %v1146
        %v1148 = vadd.f32 %v1147, 0.4994258
        %v1149 = vmul.f32 %v1129, %v1148
        %v1150 = vadd.f32 %v1149, 1.0
        %v1151 = vrcp.pop %v1150
        %v1152 = vmul.f32 %v1150, %v1151
        %v1153 = vsub.f32 1.0, %v1152
        %v1154 = vmul.f32 %v1151, %v1153
        %v1155 = vadd.f32 %v1151, %v1154
        %vm1156 = vweird.f32 %v1150
        %vm1157 = vweird.f32 %v1151
        %vm1158 = vmor %vm1156, %vm1157
        %v1159 = vsel %vm1158, %v1151, %v1155
        %v1160 = vand.u32 2147483647, %v1150
        %vm1161 = vcmp.eq.f32.partialorder %v1160, 8.507059e+37
        %v1162 = vand.u32 %v1150, 2147483648
        %v1163 = vor.u32 1.1754944e-38, %v1162
        %v1164 = vsel %vm1161, %v1163, %v1159
        %v1165 = vmul.f32 %v1140, %v1164
        %v1166 = vmin.f32 %v1165, 1.0
        %v1167 = vmax.f32 %v1166, -1.0
        %v1168 = vadd.f32 %v1167, 1.0
        %v1169 = vmul.f32 %v1126, %v1168
        %v1170 = vld [vmem:[%s249 + $0x2] sm:$0x3f]
        %v1171 = vld [vmem:[%s259] sm:$0x3]
        %v1173 = vrot.slane %v1171, 2
        %vm1175 = vcmask 1045504
        %v1176 = vsel %vm1175, %v1170, %v1173
        %v1177 = vadd.f32 %v1176, %v1169
        %vm1178 = vcmask 523264
        %1179 = vst.msk [vmem:[%s294] sm:$0xff] %vm1178, %v1177
        %s1180 = sand.u32 %s146, 1
        %s1181 = scalar_lea.sflag [#allocation6], %s1180
        %s1182 = sand.u32 %s146, 1
        %s1183 = smul.addr %s1182, 8
        %s1184 = scalar_lea.vmem [#allocation10], %s1183
        // Predicated region
        $region49: #{tpu_custom_call.1} parent=35 // pred_check
          %p1185 = pneg %p156
        $region50: #{tpu_custom_call.1} parent=35 // pred_check_branch
          %1187 = sbr.rel (%p1185) target = $region52
        $region51: #{tpu_custom_call.1} parent=35 // pred_region
          %1189 = vsyncadd %s1181, 0
          %s1190 = smul.addr %s28, 2
          %s1191 = sadd.s32 %s29, %s1190
          %s1192 = smul.addr %s1191, 8
          %s1193 = scalar_lea.hbm %s4, %s1192
          %s1195 = sshll.u32 %s1184, 4
          %s1196 = int_to_ptr.vmem [resolvable:$true] %s1195
          %s1197 = sshll.u32 %s1193, 4
          %s1198 = int_to_ptr.hbm [resolvable:$true] %s1197
          %1200 = dma.vmem_to_hbm [thread:$0]  %s1196, 128, %s1198, %s1181
        $region52: #{tpu_custom_call.1} parent=35 // pred_fallthru
          _
      $region36: #{tpu_custom_call.1} parent=5 // pred_fallthru
        _
      %p1201 = scmp.le.s32.totalorder 2, %s19
      // Predicated region
      $region53: #{tpu_custom_call.1} parent=5 // pred_check
        %p1202 = pneg %p1201
      $region54: #{tpu_custom_call.1} parent=5 // pred_check_branch
        %1204 = sbr.rel (%p1202) target = $region56
      $region55: #{tpu_custom_call.1} parent=5 // pred_region
        %s1205 = ssub.s32 %s19, 2
        // Predicated region
        $region57: #{tpu_custom_call.1} parent=55 // pred_check
          %p1206 = pneg %p162
        $region58: #{tpu_custom_call.1} parent=55 // pred_check_branch
          %1208 = sbr.rel (%p1206) target = $region60
        $region59: #{tpu_custom_call.1} parent=55 // pred_region
          %s1209 = sand.u32 %s147, 1
          %s1210 = scalar_lea.sflag [#allocation6], %s1209
          %s1211 = sand.u32 %s147, 1
          %s1212 = smul.addr %s1211, 8
          %s1213 = scalar_lea.vmem [#allocation10], %s1212
          %1215 = dma.done %s1210, 128
        $region60: #{tpu_custom_call.1} parent=55 // pred_fallthru
          _
      $region56: #{tpu_custom_call.1} parent=5 // pred_fallthru
        _
    $region6: #{tpu_custom_call.1} parent=1 // loop_footer
      %s23 = sadd.s32 1, %s19
    $region7: #{tpu_custom_call.1} parent=1 // loop_footer_branch
      %18 = sbr.rel target = $region3
    $region8: #{tpu_custom_call.1} parent=1 // loop_exit
      _
    %1216 = vsyncpa [#allocation5], 1
    %s1217 = scalar_lea.sflag [#allocation5], 1
    %1218 = vsyncpa %s1217, 1
    %1219 = vsyncpa [#allocation8], 1
    %s1220 = scalar_lea.sflag [#allocation8], 1
    %1221 = vsyncpa %s1220, 1
    %1222 = vsyncpa [#allocation6], 1
    %s1223 = scalar_lea.sflag [#allocation6], 1
    %1224 = vsyncpa %s1223, 1

</llo_original>
